<compile_context>
chip_gen: v6e
topology: v6e:2x2x1
jax: 0.10.0
libtpu: 0.0.40
codegen_flags: <defaults>
</compile_context>

<pallas_src>
import jax
import jax.numpy as jnp
from jax.experimental import pallas as pl
from jax.experimental.pallas import tpu as pltpu

_LANE = 128     # lane width (last-dim granularity)
_SUBLANE = 8    # f32 sublane granularity (second-to-last dim)


def _round_up(n, m):
    return (n + m - 1) // m * m


def _tpu_generation():
    """Best-effort TPU generation from device_kind ('TPU v6e' -> 6, ...)."""
    try:
        kind = jax.devices()[0].device_kind.lower()
    except Exception:
        return 0
    for g in (7, 6, 5, 4):
        if "v%d" % g in kind:
            return g
    return 0


def _tpu_config():
    """Per-generation tiling / VMEM knobs."""
    gen = _tpu_generation()
    if gen >= 7:        # v7x: 64 MiB VMEM per TC, 256x256 MXU, bf16 VPU
        return dict(gen=gen, vmem_cap=48 * 2**20, batch_tile=1024, bf16_vpu=True)
    if gen == 6:        # v6e: 128 MiB VMEM, 256x256 MXU, bf16 VPU
        return dict(gen=gen, vmem_cap=100 * 2**20, batch_tile=2048, bf16_vpu=True)
    if gen == 5:        # v5e: 128 MiB VMEM, 128x128 MXU, no bf16 VPU
        return dict(gen=gen, vmem_cap=100 * 2**20, batch_tile=2048, bf16_vpu=False)
    # unknown generation: conservative (v7x-like)
    return dict(gen=gen, vmem_cap=48 * 2**20, batch_tile=512, bf16_vpu=False)


def _pad_feature_dim(d, gen):
    # v6e/v7x MXUs are 256x256: pad >128 dims to multiples of 256 so the
    # systolic array is fed at full width; 128-padding already saturates
    # v5e's 128x128 MXU.
    if gen >= 6 and d > _LANE:
        return _round_up(d, 2 * _LANE)
    return _round_up(d, _LANE)


def mlp_kernel(x_ref,
               w0_ref, b0_ref,
               w1_ref, b1_ref,
               w2_ref, b2_ref,
               w3_ref, b3_ref,
               o_ref):
    """Fused 4x (matmul + bias) with LeakyReLU(0.2) between layers.

    MXU-input dtype = weight dtype; element-wise dtype = bias dtype (both
    pre-cast in the wrapper, so no per-step weight casts); accumulation is
    always f32 via preferred_element_type.
    """
    cd = w0_ref.dtype     # matmul (MXU) input dtype
    ew = b0_ref.dtype     # element-wise (bias / LeakyReLU) dtype

    def leaky(h):
        return jnp.maximum(h, 0.2 * h)   # == LeakyReLU(0.2), 2 VALU ops

    h = x_ref[...].astype(cd)

    h = jnp.dot(h, w0_ref[...], preferred_element_type=jnp.float32)
    h = leaky(h.astype(ew) + b0_ref[...])

    h = jnp.dot(h.astype(cd), w1_ref[...], preferred_element_type=jnp.float32)
    h = leaky(h.astype(ew) + b1_ref[...])

    h = jnp.dot(h.astype(cd), w2_ref[...], preferred_element_type=jnp.float32)
    h = leaky(h.astype(ew) + b2_ref[...])

    h = jnp.dot(h.astype(cd), w3_ref[...], preferred_element_type=jnp.float32)
    h = h.astype(ew) + b3_ref[...]

    o_ref[...] = h.astype(o_ref.dtype)


def mlp_forward(x, params, *, compute_dtype=jnp.bfloat16, batch_tile=None):
    """x: [B, nin] float32.  params: list of 4 (W [in, out], b [1, out]) f32.

    compute_dtype=bf16 (default) runs the MXU at native rate with f32
    accumulation; compute_dtype=f32 is the exact validation path.
    """
    cfg = _tpu_config()
    gen = cfg["gen"]

    B, nin = x.shape
    nout = params[-1][0].shape[1]

    dims = [nin] + [w.shape[1] for (w, _) in params]
    dims_p = [_pad_feature_dim(d, gen) for d in dims]
    nin_p, nout_p = dims_p[0], dims_p[-1]

    compute_dtype = jnp.dtype(compute_dtype)
    # bf16 element-wise tail only where the VPU supports bf16 (v6e/v7x).
    if compute_dtype == jnp.dtype(jnp.bfloat16) and cfg["bf16_vpu"]:
        ew_dtype = jnp.dtype(jnp.bfloat16)
    else:
        ew_dtype = jnp.dtype(jnp.float32)

    # ---------------- batch tiling ----------------
    if batch_tile is None:
        batch_tile = cfg["batch_tile"]
    TB = _round_up(min(batch_tile, _round_up(B, _SUBLANE)), _SUBLANE)

    # ---------------- VMEM budgeting ----------------
    w_item = compute_dtype.itemsize
    b_item = ew_dtype.itemsize
    x_item = jnp.dtype(x.dtype).itemsize
    param_bytes = sum(di * do * w_item + do * b_item
                      for di, do in zip(dims_p[:-1], dims_p[1:]))

    def vmem_estimate(tb, param_factor):
        io = 2 * tb * (nin_p + nout_p) * x_item      # double-buffered x / out tiles
        act = 6 * tb * max(dims_p) * 4               # activation temporaries (f32 worst case)
        return param_factor * param_bytes + io + act

    # Shrink the batch tile if the resident footprint would overflow VMEM.
    while TB > _SUBLANE and vmem_estimate(TB, 1) > cfg["vmem_cap"]:
        TB = max(_SUBLANE, _round_up(TB // 2, _SUBLANE))
    # TODO(synk): if param_bytes alone exceeds the VMEM cap (very large nh,
    # especially on v7x's 64 MiB), stream the weights per layer (extra K/N grid
    # axis or pltpu.emit_pipeline) instead of keeping all four layers resident.

    # ---------------- input: pad only if actually required ----------------
    need_row_pad = (B % _SUBLANE) != 0
    need_col_pad = nin != nin_p
    B_rows = _round_up(B, _SUBLANE) if need_row_pad else B
    if need_row_pad or need_col_pad:
        x_in = jnp.pad(x, ((0, B_rows - B), (0, nin_p - nin)))
    else:
        x_in = x                                     # zero-copy passthrough
    grid = (pl.cdiv(B_rows, TB),)                    # ragged tail -> masked partial tile

    # ---------------- params: pad AND pre-cast once (stored in HBM) -------
    flat_args = [x_in]
    for li, (w, b) in enumerate(params):
        di, do = dims_p[li], dims_p[li + 1]
        w_p = jnp.zeros((di, do), compute_dtype)
        w_p = w_p.at[:w.shape[0], :w.shape[1]].set(w.astype(compute_dtype))
        b_p = jnp.zeros((1, do), ew_dtype)
        b_p = b_p.at[:, :b.shape[1]].set(b.astype(ew_dtype))
        flat_args += [w_p, b_p]

    # Advisory cost so XLA schedules surrounding ops around the custom call.
    flops = 2 * B * sum(a * b for a, b in zip(dims[:-1], dims[1:]))
    bytes_accessed = B * nin * x_item + B * nout * x_item + param_bytes
    cost = pl.CostEstimate(flops=int(flops), transcendentals=0,
                           bytes_accessed=int(bytes_accessed))

    def build_and_run(single_buffer_weights):
        # Constant-index_map blocks never re-fetch across grid steps, so
        # double-buffering them only burns VMEM: single-buffer if supported.
        if single_buffer_weights:
            wkw = dict(pipeline_mode=pl.Buffered(1))
            param_factor = 1
        else:
            wkw = {}
            param_factor = 2
        in_specs = [pl.BlockSpec((TB, nin_p), lambda i: (i, 0))]
        for li in range(len(params)):
            di, do = dims_p[li], dims_p[li + 1]
            in_specs.append(pl.BlockSpec((di, do), lambda i: (0, 0), **wkw))
            in_specs.append(pl.BlockSpec((1, do), lambda i: (0, 0), **wkw))
        vmem_limit = int(min(max(vmem_estimate(TB, param_factor) + (8 << 20),
                                 32 << 20),
                             cfg["vmem_cap"]))
        return pl.pallas_call(
            mlp_kernel,
            out_shape=jax.ShapeDtypeStruct((B_rows, nout_p), x.dtype),
            grid=grid,
            in_specs=in_specs,
            out_specs=pl.BlockSpec((TB, nout_p), lambda i: (i, 0)),
            compiler_params=pltpu.CompilerParams(
                dimension_semantics=("parallel",),
                vmem_limit_bytes=vmem_limit,
            ),
            cost_estimate=cost,
        )(*flat_args)

    try:
        out_p = build_and_run(True)
    except Exception:
        # Fallback for jax builds where pipeline_mode=pl.Buffered(1) on a
        # constant block is not accepted.
        out_p = build_and_run(False)

    if B_rows != B or nout_p != nout:
        out_p = out_p[:B, :nout]
    return out_p


def init_mlp_params(key, nin, nout, nh):
    """PyTorch nn.Linear-style init (uniform +-1/sqrt(fan_in)); W stored [in, out]."""
    dims = [(nin, nh), (nh, nh), (nh, nh), (nh, nout)]
    params = []
    for (fan_in, fan_out) in dims:
        key, kw, kb = jax.random.split(key, 3)
        bound = 1.0 / jnp.sqrt(jnp.float32(fan_in))
        w = jax.random.uniform(kw, (fan_in, fan_out), jnp.float32, -bound, bound)
        b = jax.random.uniform(kb, (1, fan_out), jnp.float32, -bound, bound)
        params.append((w, b))
    return params


def mlp_reference(x, params):
    h = x
    for i, (w, b) in enumerate(params):
        h = h @ w + b
        if i < len(params) - 1:
            h = jnp.where(h > 0, h, 0.2 * h)
    return h


if __name__ == "__main__":
    key = jax.random.PRNGKey(0)
    k_x, k_p, k_x2 = jax.random.split(key, 3)

    B, nin, nh, nout = 8, 16, 32, 8
    x = jax.random.normal(k_x, (B, nin), jnp.float32)
    params = init_mlp_params(k_p, nin, nout, nh)
    ref = mlp_reference(x, params)

    # Exact f32 validation path: strict tolerance.
    out_f32 = jax.block_until_ready(mlp_forward(x, params, compute_dtype=jnp.float32))
    assert out_f32.shape == (B, nout), out_f32.shape
    assert jnp.allclose(out_f32, ref, atol=1e-5, rtol=1e-5), (
        float(jnp.max(jnp.abs(out_f32 - ref))))

    # Default fast path (bf16 MXU, f32 accumulation): loose tolerance.
    out_bf16 = jax.block_until_ready(mlp_forward(x, params))
    assert out_bf16.shape == (B, nout), out_bf16.shape
    assert jnp.allclose(out_bf16, ref, atol=1e-1, rtol=1e-1), (
        float(jnp.max(jnp.abs(out_bf16 - ref))))

    # Ragged batch (tile does not divide rows): exercises the masked tail tile.
    B2 = 24
    x2 = jax.random.normal(k_x2, (B2, nin), jnp.float32)
    ref2 = mlp_reference(x2, params)
    out2 = jax.block_until_ready(
        mlp_forward(x2, params, compute_dtype=jnp.float32, batch_tile=16))
    assert out2.shape == (B2, nout), out2.shape
    assert jnp.allclose(out2, ref2, atol=1e-5, rtol=1e-5), (
        float(jnp.max(jnp.abs(out2 - ref2))))

    print("KERNEL_OK")
</pallas_src>

<mosaic_0001>
module attributes {stable_mosaic.version = 11 : i64} {
  func.func @mlp_kernel(%arg0: i32, %arg1: memref<8x128xf32, #tpu.memory_space<vmem>>, %arg2: memref<128x128xf32, #tpu.memory_space<vmem>>, %arg3: memref<1x128xf32, #tpu.memory_space<vmem>>, %arg4: memref<128x128xf32, #tpu.memory_space<vmem>>, %arg5: memref<1x128xf32, #tpu.memory_space<vmem>>, %arg6: memref<128x128xf32, #tpu.memory_space<vmem>>, %arg7: memref<1x128xf32, #tpu.memory_space<vmem>>, %arg8: memref<128x128xf32, #tpu.memory_space<vmem>>, %arg9: memref<1x128xf32, #tpu.memory_space<vmem>>, %arg10: memref<8x128xf32, #tpu.memory_space<vmem>>) attributes {dimension_semantics = [#tpu.dimension_semantics<parallel>], iteration_bounds = array<i64: 1>, scalar_prefetch = 0 : i64, scratch_operands = 0 : i64, tpu.core_type = #tpu.core_type<tc>, window_params = [{transform_indices = @transform_0, window_bounds = array<i64: 8, 128>}, {pipeline_mode = #tpu.pipeline_mode<synchronous>, transform_indices = @transform_1, window_bounds = array<i64: 128, 128>}, {pipeline_mode = #tpu.pipeline_mode<synchronous>, transform_indices = @transform_2, window_bounds = array<i64: 1, 128>}, {pipeline_mode = #tpu.pipeline_mode<synchronous>, transform_indices = @transform_3, window_bounds = array<i64: 128, 128>}, {pipeline_mode = #tpu.pipeline_mode<synchronous>, transform_indices = @transform_4, window_bounds = array<i64: 1, 128>}, {pipeline_mode = #tpu.pipeline_mode<synchronous>, transform_indices = @transform_5, window_bounds = array<i64: 128, 128>}, {pipeline_mode = #tpu.pipeline_mode<synchronous>, transform_indices = @transform_6, window_bounds = array<i64: 1, 128>}, {pipeline_mode = #tpu.pipeline_mode<synchronous>, transform_indices = @transform_7, window_bounds = array<i64: 128, 128>}, {pipeline_mode = #tpu.pipeline_mode<synchronous>, transform_indices = @transform_8, window_bounds = array<i64: 1, 128>}, {transform_indices = @transform_9, window_bounds = array<i64: 8, 128>}]} {
    %c0 = arith.constant 0 : index
    %c0_0 = arith.constant 0 : index
    %0 = vector.load %arg1[%c0, %c0_0] : memref<8x128xf32, #tpu.memory_space<vmem>>, vector<8x128xf32>
    %c0_1 = arith.constant 0 : index
    %c0_2 = arith.constant 0 : index
    %1 = vector.load %arg2[%c0_1, %c0_2] : memref<128x128xf32, #tpu.memory_space<vmem>>, vector<128x128xf32>
    %cst = arith.constant dense<0.000000e+00> : vector<8x128xf32>
    %2 = tpu.matmul %0, %1, %cst {dimension_numbers = #tpu.dot_dimension_numbers<[1], [0], [0], [1], [0, 0, 1, 1], [], []>} : vector<8x128xf32>, vector<128x128xf32>, vector<8x128xf32> -> vector<8x128xf32>
    %c0_3 = arith.constant 0 : index
    %c0_4 = arith.constant 0 : index
    %3 = vector.load %arg3[%c0_3, %c0_4] : memref<1x128xf32, #tpu.memory_space<vmem>>, vector<1x128xf32>
    %4 = vector.broadcast %3 : vector<1x128xf32> to vector<8x128xf32>
    %5 = arith.addf %2, %4 : vector<8x128xf32>
    %cst_5 = arith.constant 2.000000e-01 : f32
    %6 = vector.broadcast %cst_5 : f32 to vector<8x128xf32>
    %7 = arith.mulf %6, %5 : vector<8x128xf32>
    %8 = arith.maximumf %5, %7 : vector<8x128xf32>
    %c0_6 = arith.constant 0 : index
    %c0_7 = arith.constant 0 : index
    %9 = vector.load %arg4[%c0_6, %c0_7] : memref<128x128xf32, #tpu.memory_space<vmem>>, vector<128x128xf32>
    %cst_8 = arith.constant dense<0.000000e+00> : vector<8x128xf32>
    %10 = tpu.matmul %8, %9, %cst_8 {dimension_numbers = #tpu.dot_dimension_numbers<[1], [0], [0], [1], [0, 0, 1, 1], [], []>} : vector<8x128xf32>, vector<128x128xf32>, vector<8x128xf32> -> vector<8x128xf32>
    %c0_9 = arith.constant 0 : index
    %c0_10 = arith.constant 0 : index
    %11 = vector.load %arg5[%c0_9, %c0_10] : memref<1x128xf32, #tpu.memory_space<vmem>>, vector<1x128xf32>
    %12 = vector.broadcast %11 : vector<1x128xf32> to vector<8x128xf32>
    %13 = arith.addf %10, %12 : vector<8x128xf32>
    %cst_11 = arith.constant 2.000000e-01 : f32
    %14 = vector.broadcast %cst_11 : f32 to vector<8x128xf32>
    %15 = arith.mulf %14, %13 : vector<8x128xf32>
    %16 = arith.maximumf %13, %15 : vector<8x128xf32>
    %c0_12 = arith.constant 0 : index
    %c0_13 = arith.constant 0 : index
    %17 = vector.load %arg6[%c0_12, %c0_13] : memref<128x128xf32, #tpu.memory_space<vmem>>, vector<128x128xf32>
    %cst_14 = arith.constant dense<0.000000e+00> : vector<8x128xf32>
    %18 = tpu.matmul %16, %17, %cst_14 {dimension_numbers = #tpu.dot_dimension_numbers<[1], [0], [0], [1], [0, 0, 1, 1], [], []>} : vector<8x128xf32>, vector<128x128xf32>, vector<8x128xf32> -> vector<8x128xf32>
    %c0_15 = arith.constant 0 : index
    %c0_16 = arith.constant 0 : index
    %19 = vector.load %arg7[%c0_15, %c0_16] : memref<1x128xf32, #tpu.memory_space<vmem>>, vector<1x128xf32>
    %20 = vector.broadcast %19 : vector<1x128xf32> to vector<8x128xf32>
    %21 = arith.addf %18, %20 : vector<8x128xf32>
    %cst_17 = arith.constant 2.000000e-01 : f32
    %22 = vector.broadcast %cst_17 : f32 to vector<8x128xf32>
    %23 = arith.mulf %22, %21 : vector<8x128xf32>
    %24 = arith.maximumf %21, %23 : vector<8x128xf32>
    %c0_18 = arith.constant 0 : index
    %c0_19 = arith.constant 0 : index
    %25 = vector.load %arg8[%c0_18, %c0_19] : memref<128x128xf32, #tpu.memory_space<vmem>>, vector<128x128xf32>
    %cst_20 = arith.constant dense<0.000000e+00> : vector<8x128xf32>
    %26 = tpu.matmul %24, %25, %cst_20 {dimension_numbers = #tpu.dot_dimension_numbers<[1], [0], [0], [1], [0, 0, 1, 1], [], []>} : vector<8x128xf32>, vector<128x128xf32>, vector<8x128xf32> -> vector<8x128xf32>
    %c0_21 = arith.constant 0 : index
    %c0_22 = arith.constant 0 : index
    %27 = vector.load %arg9[%c0_21, %c0_22] : memref<1x128xf32, #tpu.memory_space<vmem>>, vector<1x128xf32>
    %28 = vector.broadcast %27 : vector<1x128xf32> to vector<8x128xf32>
    %29 = arith.addf %26, %28 : vector<8x128xf32>
    %c0_23 = arith.constant 0 : index
    %c0_24 = arith.constant 0 : index
    %30 = vector.load %arg10[%c0_23, %c0_24] : memref<8x128xf32, #tpu.memory_space<vmem>>, vector<8x128xf32>
    tpu.vector_store %arg10[%c0_23, %c0_24], %29 {strides = array<i32>} : memref<8x128xf32, #tpu.memory_space<vmem>>, vector<8x128xf32>,
    return
  }
  func.func @transform_0(%arg0: i32) -> (i32, i32) {
    %c0_i32 = arith.constant 0 : i32
    %c0_i32_0 = arith.constant 0 : i32
    return %arg0, %c0_i32 : i32, i32
  }
  func.func @transform_1(%arg0: i32) -> (i32, i32) {
    %c0_i32 = arith.constant 0 : i32
    %c0_i32_0 = arith.constant 0 : i32
    %c0_i32_1 = arith.constant 0 : i32
    return %c0_i32, %c0_i32_0 : i32, i32
  }
  func.func @transform_2(%arg0: i32) -> (i32, i32) {
    %c0_i32 = arith.constant 0 : i32
    %c0_i32_0 = arith.constant 0 : i32
    %c0_i32_1 = arith.constant 0 : i32
    return %c0_i32, %c0_i32_0 : i32, i32
  }
  func.func @transform_3(%arg0: i32) -> (i32, i32) {
    %c0_i32 = arith.constant 0 : i32
    %c0_i32_0 = arith.constant 0 : i32
    %c0_i32_1 = arith.constant 0 : i32
    return %c0_i32, %c0_i32_0 : i32, i32
  }
  func.func @transform_4(%arg0: i32) -> (i32, i32) {
    %c0_i32 = arith.constant 0 : i32
    %c0_i32_0 = arith.constant 0 : i32
    %c0_i32_1 = arith.constant 0 : i32
    return %c0_i32, %c0_i32_0 : i32, i32
  }
  func.func @transform_5(%arg0: i32) -> (i32, i32) {
    %c0_i32 = arith.constant 0 : i32
    %c0_i32_0 = arith.constant 0 : i32
    %c0_i32_1 = arith.constant 0 : i32
    return %c0_i32, %c0_i32_0 : i32, i32
  }
  func.func @transform_6(%arg0: i32) -> (i32, i32) {
    %c0_i32 = arith.constant 0 : i32
    %c0_i32_0 = arith.constant 0 : i32
    %c0_i32_1 = arith.constant 0 : i32
    return %c0_i32, %c0_i32_0 : i32, i32
  }
  func.func @transform_7(%arg0: i32) -> (i32, i32) {
    %c0_i32 = arith.constant 0 : i32
    %c0_i32_0 = arith.constant 0 : i32
    %c0_i32_1 = arith.constant 0 : i32
    return %c0_i32, %c0_i32_0 : i32, i32
  }
  func.func @transform_8(%arg0: i32) -> (i32, i32) {
    %c0_i32 = arith.constant 0 : i32
    %c0_i32_0 = arith.constant 0 : i32
    %c0_i32_1 = arith.constant 0 : i32
    return %c0_i32, %c0_i32_0 : i32, i32
  }
  func.func @transform_9(%arg0: i32) -> (i32, i32) {
    %c0_i32 = arith.constant 0 : i32
    %c0_i32_0 = arith.constant 0 : i32
    return %arg0, %c0_i32 : i32, i32
  }
}

module attributes {stable_mosaic.version = 11 : i64} {
  func.func @mlp_kernel(%arg0: i32, %arg1: memref<8x128xf32, #tpu.memory_space<vmem>>, %arg2: memref<128x128xf32, #tpu.memory_space<vmem>>, %arg3: memref<1x128xf32, #tpu.memory_space<vmem>>, %arg4: memref<128x128xf32, #tpu.memory_space<vmem>>, %arg5: memref<1x128xf32, #tpu.memory_space<vmem>>, %arg6: memref<128x128xf32, #tpu.memory_space<vmem>>, %arg7: memref<1x128xf32, #tpu.memory_space<vmem>>, %arg8: memref<128x128xf32, #tpu.memory_space<vmem>>, %arg9: memref<1x128xf32, #tpu.memory_space<vmem>>, %arg10: memref<8x128xf32, #tpu.memory_space<vmem>>) attributes {dimension_semantics = [#tpu.dimension_semantics<parallel>], iteration_bounds = array<i64: 1>, scalar_prefetch = 0 : i64, scratch_operands = 0 : i64, tpu.core_type = #tpu.core_type<tc>, window_params = [{transform_indices = @transform_0, window_bounds = array<i64: 8, 128>}, {pipeline_mode = #tpu.pipeline_mode<synchronous>, transform_indices = @transform_1, window_bounds = array<i64: 128, 128>}, {pipeline_mode = #tpu.pipeline_mode<synchronous>, transform_indices = @transform_2, window_bounds = array<i64: 1, 128>}, {pipeline_mode = #tpu.pipeline_mode<synchronous>, transform_indices = @transform_3, window_bounds = array<i64: 128, 128>}, {pipeline_mode = #tpu.pipeline_mode<synchronous>, transform_indices = @transform_4, window_bounds = array<i64: 1, 128>}, {pipeline_mode = #tpu.pipeline_mode<synchronous>, transform_indices = @transform_5, window_bounds = array<i64: 128, 128>}, {pipeline_mode = #tpu.pipeline_mode<synchronous>, transform_indices = @transform_6, window_bounds = array<i64: 1, 128>}, {pipeline_mode = #tpu.pipeline_mode<synchronous>, transform_indices = @transform_7, window_bounds = array<i64: 128, 128>}, {pipeline_mode = #tpu.pipeline_mode<synchronous>, transform_indices = @transform_8, window_bounds = array<i64: 1, 128>}, {transform_indices = @transform_9, window_bounds = array<i64: 8, 128>}]} {
    %c0 = arith.constant 0 : index
    %c0_0 = arith.constant 0 : index
    %0 = vector.load %arg1[%c0, %c0_0] : memref<8x128xf32, #tpu.memory_space<vmem>>, vector<8x128xf32>
    %c0_1 = arith.constant 0 : index
    %c0_2 = arith.constant 0 : index
    %1 = vector.load %arg2[%c0_1, %c0_2] : memref<128x128xf32, #tpu.memory_space<vmem>>, vector<128x128xf32>
    %cst = arith.constant dense<0.000000e+00> : vector<8x128xf32>
    %2 = tpu.matmul %0, %1, %cst {dimension_numbers = #tpu.dot_dimension_numbers<[1], [0], [0], [1], [0, 0, 1, 1], [], []>} : vector<8x128xf32>, vector<128x128xf32>, vector<8x128xf32> -> vector<8x128xf32>
    %c0_3 = arith.constant 0 : index
    %c0_4 = arith.constant 0 : index
    %3 = vector.load %arg3[%c0_3, %c0_4] : memref<1x128xf32, #tpu.memory_space<vmem>>, vector<1x128xf32>
    %4 = vector.broadcast %3 : vector<1x128xf32> to vector<8x128xf32>
    %5 = arith.addf %2, %4 : vector<8x128xf32>
    %cst_5 = arith.constant 2.000000e-01 : f32
    %6 = vector.broadcast %cst_5 : f32 to vector<8x128xf32>
    %7 = arith.mulf %6, %5 : vector<8x128xf32>
    %8 = arith.maximumf %5, %7 : vector<8x128xf32>
    %c0_6 = arith.constant 0 : index
    %c0_7 = arith.constant 0 : index
    %9 = vector.load %arg4[%c0_6, %c0_7] : memref<128x128xf32, #tpu.memory_space<vmem>>, vector<128x128xf32>
    %cst_8 = arith.constant dense<0.000000e+00> : vector<8x128xf32>
    %10 = tpu.matmul %8, %9, %cst_8 {dimension_numbers = #tpu.dot_dimension_numbers<[1], [0], [0], [1], [0, 0, 1, 1], [], []>} : vector<8x128xf32>, vector<128x128xf32>, vector<8x128xf32> -> vector<8x128xf32>
    %c0_9 = arith.constant 0 : index
    %c0_10 = arith.constant 0 : index
    %11 = vector.load %arg5[%c0_9, %c0_10] : memref<1x128xf32, #tpu.memory_space<vmem>>, vector<1x128xf32>
    %12 = vector.broadcast %11 : vector<1x128xf32> to vector<8x128xf32>
    %13 = arith.addf %10, %12 : vector<8x128xf32>
    %cst_11 = arith.constant 2.000000e-01 : f32
    %14 = vector.broadcast %cst_11 : f32 to vector<8x128xf32>
    %15 = arith.mulf %14, %13 : vector<8x128xf32>
    %16 = arith.maximumf %13, %15 : vector<8x128xf32>
    %c0_12 = arith.constant 0 : index
    %c0_13 = arith.constant 0 : index
    %17 = vector.load %arg6[%c0_12, %c0_13] : memref<128x128xf32, #tpu.memory_space<vmem>>, vector<128x128xf32>
    %cst_14 = arith.constant dense<0.000000e+00> : vector<8x128xf32>
    %18 = tpu.matmul %16, %17, %cst_14 {dimension_numbers = #tpu.dot_dimension_numbers<[1], [0], [0], [1], [0, 0, 1, 1], [], []>} : vector<8x128xf32>, vector<128x128xf32>, vector<8x128xf32> -> vector<8x128xf32>
    %c0_15 = arith.constant 0 : index
    %c0_16 = arith.constant 0 : index
    %19 = vector.load %arg7[%c0_15, %c0_16] : memref<1x128xf32, #tpu.memory_space<vmem>>, vector<1x128xf32>
    %20 = vector.broadcast %19 : vector<1x128xf32> to vector<8x128xf32>
    %21 = arith.addf %18, %20 : vector<8x128xf32>
    %cst_17 = arith.constant 2.000000e-01 : f32
    %22 = vector.broadcast %cst_17 : f32 to vector<8x128xf32>
    %23 = arith.mulf %22, %21 : vector<8x128xf32>
    %24 = arith.maximumf %21, %23 : vector<8x128xf32>
    %c0_18 = arith.constant 0 : index
    %c0_19 = arith.constant 0 : index
    %25 = vector.load %arg8[%c0_18, %c0_19] : memref<128x128xf32, #tpu.memory_space<vmem>>, vector<128x128xf32>
    %cst_20 = arith.constant dense<0.000000e+00> : vector<8x128xf32>
    %26 = tpu.matmul %24, %25, %cst_20 {dimension_numbers = #tpu.dot_dimension_numbers<[1], [0], [0], [1], [0, 0, 1, 1], [], []>} : vector<8x128xf32>, vector<128x128xf32>, vector<8x128xf32> -> vector<8x128xf32>
    %c0_21 = arith.constant 0 : index
    %c0_22 = arith.constant 0 : index
    %27 = vector.load %arg9[%c0_21, %c0_22] : memref<1x128xf32, #tpu.memory_space<vmem>>, vector<1x128xf32>
    %28 = vector.broadcast %27 : vector<1x128xf32> to vector<8x128xf32>
    %29 = arith.addf %26, %28 : vector<8x128xf32>
    %c0_23 = arith.constant 0 : index
    %c0_24 = arith.constant 0 : index
    %30 = vector.load %arg10[%c0_23, %c0_24] : memref<8x128xf32, #tpu.memory_space<vmem>>, vector<8x128xf32>
    tpu.vector_store %arg10[%c0_23, %c0_24], %29 {strides = array<i32>} : memref<8x128xf32, #tpu.memory_space<vmem>>, vector<8x128xf32>,
    return
  }
  func.func @transform_0(%arg0: i32) -> (i32, i32) {
    %c0_i32 = arith.constant 0 : i32
    %c0_i32_0 = arith.constant 0 : i32
    return %arg0, %c0_i32 : i32, i32
  }
  func.func @transform_1(%arg0: i32) -> (i32, i32) {
    %c0_i32 = arith.constant 0 : i32
    %c0_i32_0 = arith.constant 0 : i32
    %c0_i32_1 = arith.constant 0 : i32
    return %c0_i32, %c0_i32_0 : i32, i32
  }
  func.func @transform_2(%arg0: i32) -> (i32, i32) {
    %c0_i32 = arith.constant 0 : i32
    %c0_i32_0 = arith.constant 0 : i32
    %c0_i32_1 = arith.constant 0 : i32
    return %c0_i32, %c0_i32_0 : i32, i32
  }
  func.func @transform_3(%arg0: i32) -> (i32, i32) {
    %c0_i32 = arith.constant 0 : i32
    %c0_i32_0 = arith.constant 0 : i32
    %c0_i32_1 = arith.constant 0 : i32
    return %c0_i32, %c0_i32_0 : i32, i32
  }
  func.func @transform_4(%arg0: i32) -> (i32, i32) {
    %c0_i32 = arith.constant 0 : i32
    %c0_i32_0 = arith.constant 0 : i32
    %c0_i32_1 = arith.constant 0 : i32
    return %c0_i32, %c0_i32_0 : i32, i32
  }
  func.func @transform_5(%arg0: i32) -> (i32, i32) {
    %c0_i32 = arith.constant 0 : i32
    %c0_i32_0 = arith.constant 0 : i32
    %c0_i32_1 = arith.constant 0 : i32
    return %c0_i32, %c0_i32_0 : i32, i32
  }
  func.func @transform_6(%arg0: i32) -> (i32, i32) {
    %c0_i32 = arith.constant 0 : i32
    %c0_i32_0 = arith.constant 0 : i32
    %c0_i32_1 = arith.constant 0 : i32
    return %c0_i32, %c0_i32_0 : i32, i32
  }
  func.func @transform_7(%arg0: i32) -> (i32, i32) {
    %c0_i32 = arith.constant 0 : i32
    %c0_i32_0 = arith.constant 0 : i32
    %c0_i32_1 = arith.constant 0 : i32
    return %c0_i32, %c0_i32_0 : i32, i32
  }
  func.func @transform_8(%arg0: i32) -> (i32, i32) {
    %c0_i32 = arith.constant 0 : i32
    %c0_i32_0 = arith.constant 0 : i32
    %c0_i32_1 = arith.constant 0 : i32
    return %c0_i32, %c0_i32_0 : i32, i32
  }
  func.func @transform_9(%arg0: i32) -> (i32, i32) {
    %c0_i32 = arith.constant 0 : i32
    %c0_i32_0 = arith.constant 0 : i32
    return %arg0, %c0_i32 : i32, i32
  }
}

</mosaic_0001>

<llo_original>
// kernel: tpu_custom_call.1
$region0: #{tpu_custom_call.1}
  #allocation0 [shape = 'u32[]', space=smem, size = 0x4, offset = 0x4, fixed_abs, tag = 'smem constant byte address 0x4 - core index']
  #allocation1 [shape = 'u32[144,128]{1,0:T(1,128)}', space=vmem, size = 0x12000, scoped, tag = 'internal scratch']
  %s0 = inlined_call_operand.hbm [shape: f32[8,128], index: 0, kind: input, shape index: {}]
  %s1 = inlined_call_operand.hbm [shape: f32[128,128], index: 1, kind: input, shape index: {}]
  %s2 = inlined_call_operand.vmem [shape: f32[1,128], index: 2, kind: input, shape index: {}]
  %s3 = inlined_call_operand.hbm [shape: f32[128,128], index: 3, kind: input, shape index: {}]
  %s4 = inlined_call_operand.vmem [shape: f32[1,128], index: 4, kind: input, shape index: {}]
  %s5 = inlined_call_operand.hbm [shape: f32[128,128], index: 5, kind: input, shape index: {}]
  %s6 = inlined_call_operand.vmem [shape: f32[1,128], index: 6, kind: input, shape index: {}]
  %s7 = inlined_call_operand.hbm [shape: f32[128,128], index: 7, kind: input, shape index: {}]
  %s8 = inlined_call_operand.vmem [shape: f32[1,128], index: 8, kind: input, shape index: {}]
  %s9 = inlined_call_operand.hbm [shape: f32[8,128], index: 9, kind: output, shape index: {}]
  %s10 = sld [smem:[#allocation0]]
  $region66: #{tpu_custom_call.1} parent=0
    _
  %s12 = ssub.s32 1, %s10
  %s13 = scalar_select 0, %s12, %s10
  $region1: #{tpu_custom_call.1} parent=0
    #allocation2 [shape = 'u8[4096]{0}', space=vmem, size = 0x1000, scoped, tag = 'input window, operand 0, single buffered']
    #allocation3 [shape = 's32[1]{0}', space=sflag, size = 0x4, scoped, tag = 'scoped memory for tpu_custom_call.1']
    #allocation4 [shape = 's32[1]{0}', space=sflag, size = 0x4, scoped, tag = 'scoped memory for tpu_custom_call.1']
    #allocation5 [shape = 'u8[65536]{0}', space=vmem, size = 0x10000, scoped, tag = 'input window, operand 1, single buffered']
    #allocation6 [shape = 's32[1]{0}', space=sflag, size = 0x4, scoped, tag = 'scoped memory for tpu_custom_call.1']
    #allocation7 [shape = 'u8[65536]{0}', space=vmem, size = 0x10000, scoped, tag = 'input window, operand 3, single buffered']
    #allocation8 [shape = 'u8[65536]{0}', space=vmem, size = 0x10000, scoped, tag = 'input window, operand 5, single buffered']
    #allocation9 [shape = 's32[1]{0}', space=sflag, size = 0x4, scoped, tag = 'scoped memory for tpu_custom_call.1']
    #allocation10 [shape = 'u8[65536]{0}', space=vmem, size = 0x10000, scoped, tag = 'input window, operand 7, single buffered']
    #allocation11 [shape = 'u8[4096]{0}', space=vmem, size = 0x1000, scoped, tag = 'output window, operand 0, single buffered']
    %14 = vsyncpa [#allocation3], 0
    %15 = vsyncpa [#allocation6], 0
    %16 = vsyncpa [#allocation9], 0
    %17 = vsyncpa [#allocation4], 0
    // Predicated region
    $region2: #{tpu_custom_call.1} parent=1 // pred_check
      _
    $region3: #{tpu_custom_call.1} parent=1 // pred_check_branch
      %19 = sbr.rel (0) target = $region5
    $region4: #{tpu_custom_call.1} parent=1 // pred_region
      %s21 = ssub.s32 128, 128
      %22 = vsyncadd [#allocation3], %s21
      %s24 = sshll.u32 [#allocation2], 4
      %s25 = int_to_ptr.vmem [resolvable:$true] %s24
      %27 = dma.hbm_to_vmem [thread:$0]  %s0, 128, %s25, [#allocation3]
    $region5: #{tpu_custom_call.1} parent=1 // pred_fallthru
      _
    // Predicated region
    $region6: #{tpu_custom_call.1} parent=1 // pred_check
      _
    $region7: #{tpu_custom_call.1} parent=1 // pred_check_branch
      %29 = sbr.rel (0) target = $region9
    $region8: #{tpu_custom_call.1} parent=1 // pred_region
      %s31 = ssub.s32 2048, 2048
      %32 = vsyncadd [#allocation6], %s31
      %s33 = sshll.u32 [#allocation5], 4
      %s34 = int_to_ptr.vmem [resolvable:$true] %s33
      %39 = dma.hbm_to_vmem [thread:$0]  %s1, 2048, %s34, [#allocation6], 128, 128, 8
    $region9: #{tpu_custom_call.1} parent=1 // pred_fallthru
      _
    // Predicated region
    $region10: #{tpu_custom_call.1} parent=1 // pred_check
      _
    $region11: #{tpu_custom_call.1} parent=1 // pred_check_branch
      %41 = sbr.rel (0) target = $region13
    $region12: #{tpu_custom_call.1} parent=1 // pred_region
      _
    $region13: #{tpu_custom_call.1} parent=1 // pred_fallthru
      _
    // Predicated region
    $region14: #{tpu_custom_call.1} parent=1 // pred_check
      _
    $region15: #{tpu_custom_call.1} parent=1 // pred_check_branch
      %43 = sbr.rel (0) target = $region17
    $region16: #{tpu_custom_call.1} parent=1 // pred_region
      %s45 = ssub.s32 2048, 2048
      %46 = vsyncadd [#allocation6], %s45
      %s47 = sshll.u32 [#allocation7], 4
      %s48 = int_to_ptr.vmem [resolvable:$true] %s47
      %53 = dma.hbm_to_vmem [thread:$0]  %s3, 2048, %s48, [#allocation6], 128, 128, 8
    $region17: #{tpu_custom_call.1} parent=1 // pred_fallthru
      _
    // Predicated region
    $region18: #{tpu_custom_call.1} parent=1 // pred_check
      _
    $region19: #{tpu_custom_call.1} parent=1 // pred_check_branch
      %55 = sbr.rel (0) target = $region21
    $region20: #{tpu_custom_call.1} parent=1 // pred_region
      _
    $region21: #{tpu_custom_call.1} parent=1 // pred_fallthru
      _
    // Predicated region
    $region22: #{tpu_custom_call.1} parent=1 // pred_check
      _
    $region23: #{tpu_custom_call.1} parent=1 // pred_check_branch
      %57 = sbr.rel (0) target = $region25
    $region24: #{tpu_custom_call.1} parent=1 // pred_region
      %s59 = ssub.s32 2048, 2048
      %60 = vsyncadd [#allocation9], %s59
      %s61 = sshll.u32 [#allocation8], 4
      %s62 = int_to_ptr.vmem [resolvable:$true] %s61
      %67 = dma.hbm_to_vmem [thread:$0]  %s5, 2048, %s62, [#allocation9], 128, 128, 8
    $region25: #{tpu_custom_call.1} parent=1 // pred_fallthru
      _
    // Predicated region
    $region26: #{tpu_custom_call.1} parent=1 // pred_check
      _
    $region27: #{tpu_custom_call.1} parent=1 // pred_check_branch
      %69 = sbr.rel (0) target = $region29
    $region28: #{tpu_custom_call.1} parent=1 // pred_region
      _
    $region29: #{tpu_custom_call.1} parent=1 // pred_fallthru
      _
    // Predicated region
    $region30: #{tpu_custom_call.1} parent=1 // pred_check
      _
    $region31: #{tpu_custom_call.1} parent=1 // pred_check_branch
      %71 = sbr.rel (0) target = $region33
    $region32: #{tpu_custom_call.1} parent=1 // pred_region
      %s73 = ssub.s32 2048, 2048
      %74 = vsyncadd [#allocation9], %s73
      %s75 = sshll.u32 [#allocation10], 4
      %s76 = int_to_ptr.vmem [resolvable:$true] %s75
      %81 = dma.hbm_to_vmem [thread:$0]  %s7, 2048, %s76, [#allocation9], 128, 128, 8
    $region33: #{tpu_custom_call.1} parent=1 // pred_fallthru
      _
    // Predicated region
    $region34: #{tpu_custom_call.1} parent=1 // pred_check
      _
    $region35: #{tpu_custom_call.1} parent=1 // pred_check_branch
      %83 = sbr.rel (0) target = $region37
    $region36: #{tpu_custom_call.1} parent=1 // pred_region
      _
    $region37: #{tpu_custom_call.1} parent=1 // pred_fallthru
      _
    // Predicated region
    $region38: #{tpu_custom_call.1} parent=1 // pred_check
      _
    $region39: #{tpu_custom_call.1} parent=1 // pred_check_branch
      %85 = sbr.rel (0) target = $region41
    $region40: #{tpu_custom_call.1} parent=1 // pred_region
      %86 = dma.done [#allocation3], 128
    $region41: #{tpu_custom_call.1} parent=1 // pred_fallthru
      _
    // Predicated region
    $region42: #{tpu_custom_call.1} parent=1 // pred_check
      _
    $region43: #{tpu_custom_call.1} parent=1 // pred_check_branch
      %88 = sbr.rel (0) target = $region45
    $region44: #{tpu_custom_call.1} parent=1 // pred_region
      %89 = dma.done [#allocation6], 2048
    $region45: #{tpu_custom_call.1} parent=1 // pred_fallthru
      _
    // Predicated region
    $region46: #{tpu_custom_call.1} parent=1 // pred_check
      _
    $region47: #{tpu_custom_call.1} parent=1 // pred_check_branch
      %91 = sbr.rel (0) target = $region49
    $region48: #{tpu_custom_call.1} parent=1 // pred_region
      %92 = dma.done [#allocation6], 2048
    $region49: #{tpu_custom_call.1} parent=1 // pred_fallthru
      _
    // Predicated region
    $region50: #{tpu_custom_call.1} parent=1 // pred_check
      _
    $region51: #{tpu_custom_call.1} parent=1 // pred_check_branch
      %94 = sbr.rel (0) target = $region53
    $region52: #{tpu_custom_call.1} parent=1 // pred_region
      %95 = dma.done [#allocation9], 2048
    $region53: #{tpu_custom_call.1} parent=1 // pred_fallthru
      _
    // Predicated region
    $region54: #{tpu_custom_call.1} parent=1 // pred_check
      _
    $region55: #{tpu_custom_call.1} parent=1 // pred_check_branch
      %97 = sbr.rel (0) target = $region57
    $region56: #{tpu_custom_call.1} parent=1 // pred_region
      %98 = dma.done [#allocation9], 2048
    $region57: #{tpu_custom_call.1} parent=1 // pred_fallthru
      _
    %v99 = vld [vmem:[#allocation2] sm:$0xff]
    %v100 = vld [vmem:[#allocation5] sm:$0xff]
    %v101 = vld [vmem:[#allocation5 + $0x8] sm:$0xff]
    %v102 = vld [vmem:[#allocation5 + $0x10] sm:$0xff]
    %v103 = vld [vmem:[#allocation5 + $0x18] sm:$0xff]
    %v104 = vld [vmem:[#allocation5 + $0x20] sm:$0xff]
    %v105 = vld [vmem:[#allocation5 + $0x28] sm:$0xff]
    %v106 = vld [vmem:[#allocation5 + $0x30] sm:$0xff]
    %v107 = vld [vmem:[#allocation5 + $0x38] sm:$0xff]
    %v108 = vld [vmem:[#allocation5 + $0x40] sm:$0xff]
    %v109 = vld [vmem:[#allocation5 + $0x48] sm:$0xff]
    %v110 = vld [vmem:[#allocation5 + $0x50] sm:$0xff]
    %v111 = vld [vmem:[#allocation5 + $0x58] sm:$0xff]
    %v112 = vld [vmem:[#allocation5 + $0x60] sm:$0xff]
    %v113 = vld [vmem:[#allocation5 + $0x68] sm:$0xff]
    %v114 = vld [vmem:[#allocation5 + $0x70] sm:$0xff]
    %v115 = vld [vmem:[#allocation5 + $0x78] sm:$0xff]
    %v116 = vld [vmem:[%s2] sm:$0x1]
    %v118 = vlaneseq
    %v119 = vshrl.u32 %v118, 7
    %v120 = vsub.s32 0, %v119
    %v121 = vrot.slane %v116, %v120
    %123 = vmatprep.subr.mxu0 0.0
    %124 = vmatpush1.msra.mxu0 %v115
    %125 = vmatprep.subr.mxu0 0.0
    %126 = vmatpush1.msra.mxu0 %v114
    %127 = vmatprep.subr.mxu0 0.0
    %128 = vmatpush1.msra.mxu0 %v113
    %129 = vmatprep.subr.mxu0 0.0
    %130 = vmatpush1.msra.mxu0 %v112
    %131 = vmatprep.subr.mxu0 0.0
    %132 = vmatpush1.msra.mxu0 %v111
    %133 = vmatprep.subr.mxu0 0.0
    %134 = vmatpush1.msra.mxu0 %v110
    %135 = vmatprep.subr.mxu0 0.0
    %136 = vmatpush1.msra.mxu0 %v109
    %137 = vmatprep.subr.mxu0 0.0
    %138 = vmatpush1.msra.mxu0 %v108
    %139 = vmatprep.subr.mxu0 0.0
    %140 = vmatpush1.msra.mxu0 %v107
    %141 = vmatprep.subr.mxu0 0.0
    %142 = vmatpush1.msra.mxu0 %v106
    %143 = vmatprep.subr.mxu0 0.0
    %144 = vmatpush1.msra.mxu0 %v105
    %145 = vmatprep.subr.mxu0 0.0
    %146 = vmatpush1.msra.mxu0 %v104
    %147 = vmatprep.subr.mxu0 0.0
    %148 = vmatpush1.msra.mxu0 %v103
    %149 = vmatprep.subr.mxu0 0.0
    %150 = vmatpush1.msra.mxu0 %v102
    %151 = vmatprep.subr.mxu0 0.0
    %152 = vmatpush1.msra.mxu0 %v101
    %153 = vmatprep.subr.mxu0 0.0
    %154 = vmatpush1.msra.mxu0 %v100
    %155 = vmatprep.subr.mxu0 0.0
    %156 = vmatpush2.msra.mxu0 0.0
    %157 = vmatprep.subr.mxu0 0.0
    %158 = vmatpush2.msra.mxu0 0.0
    %159 = vmatprep.subr.mxu0 0.0
    %160 = vmatpush2.msra.mxu0 0.0
    %161 = vmatprep.subr.mxu0 0.0
    %162 = vmatpush2.msra.mxu0 0.0
    %163 = vmatprep.subr.mxu0 0.0
    %164 = vmatpush2.msra.mxu0 0.0
    %165 = vmatprep.subr.mxu0 0.0
    %166 = vmatpush2.msra.mxu0 0.0
    %167 = vmatprep.subr.mxu0 0.0
    %168 = vmatpush2.msra.mxu0 0.0
    %169 = vmatprep.subr.mxu0 0.0
    %170 = vmatpush2.msra.mxu0 0.0
    %171 = vmatprep.subr.mxu0 0.0
    %172 = vmatpush2.msra.mxu0 0.0
    %173 = vmatprep.subr.mxu0 0.0
    %174 = vmatpush2.msra.mxu0 0.0
    %175 = vmatprep.subr.mxu0 0.0
    %176 = vmatpush2.msra.mxu0 0.0
    %177 = vmatprep.subr.mxu0 0.0
    %178 = vmatpush2.msra.mxu0 0.0
    %179 = vmatprep.subr.mxu0 0.0
    %180 = vmatpush2.msra.mxu0 0.0
    %181 = vmatprep.subr.mxu0 0.0
    %182 = vmatpush2.msra.mxu0 0.0
    %183 = vmatprep.subr.mxu0 0.0
    %184 = vmatpush2.msra.mxu0 0.0
    %185 = vmatprep.subr.mxu0 0.0
    %186 = vmatpush2.msra.mxu0 0.0
    %187 = vmatprep.mubr.f32.mxu0 0.0
    %188 = vmatmul.mubr.f32.gmra.mxu0 %v99
    %v189 = vpop.f32.mrf.mxu0
    %v190 = vadd.f32 %v121, %v189
    %v191 = vpop.f32.mrf.mxu0
    %192 = vdwg.mxu0
    %v193 = vmul.f32 %v190, 0.2
    %v194 = vmax.f32 %v190, %v193
    %v195 = vld [vmem:[#allocation7] sm:$0xff]
    %v196 = vld [vmem:[#allocation7 + $0x8] sm:$0xff]
    %v197 = vld [vmem:[#allocation7 + $0x10] sm:$0xff]
    %v198 = vld [vmem:[#allocation7 + $0x18] sm:$0xff]
    %v199 = vld [vmem:[#allocation7 + $0x20] sm:$0xff]
    %v200 = vld [vmem:[#allocation7 + $0x28] sm:$0xff]
    %v201 = vld [vmem:[#allocation7 + $0x30] sm:$0xff]
    %v202 = vld [vmem:[#allocation7 + $0x38] sm:$0xff]
    %v203 = vld [vmem:[#allocation7 + $0x40] sm:$0xff]
    %v204 = vld [vmem:[#allocation7 + $0x48] sm:$0xff]
    %v205 = vld [vmem:[#allocation7 + $0x50] sm:$0xff]
    %v206 = vld [vmem:[#allocation7 + $0x58] sm:$0xff]
    %v207 = vld [vmem:[#allocation7 + $0x60] sm:$0xff]
    %v208 = vld [vmem:[#allocation7 + $0x68] sm:$0xff]
    %v209 = vld [vmem:[#allocation7 + $0x70] sm:$0xff]
    %v210 = vld [vmem:[#allocation7 + $0x78] sm:$0xff]
    %v211 = vld [vmem:[%s4] sm:$0x1]
    %v213 = vlaneseq
    %v214 = vshrl.u32 %v213, 7
    %v215 = vsub.s32 0, %v214
    %v216 = vrot.slane %v211, %v215
    %218 = vmatprep.subr.mxu0 0.0
    %219 = vmatpush1.msra.mxu0 %v210
    %220 = vmatprep.subr.mxu0 0.0
    %221 = vmatpush1.msra.mxu0 %v209
    %222 = vmatprep.subr.mxu0 0.0
    %223 = vmatpush1.msra.mxu0 %v208
    %224 = vmatprep.subr.mxu0 0.0
    %225 = vmatpush1.msra.mxu0 %v207
    %226 = vmatprep.subr.mxu0 0.0
    %227 = vmatpush1.msra.mxu0 %v206
    %228 = vmatprep.subr.mxu0 0.0
    %229 = vmatpush1.msra.mxu0 %v205
    %230 = vmatprep.subr.mxu0 0.0
    %231 = vmatpush1.msra.mxu0 %v204
    %232 = vmatprep.subr.mxu0 0.0
    %233 = vmatpush1.msra.mxu0 %v203
    %234 = vmatprep.subr.mxu0 0.0
    %235 = vmatpush1.msra.mxu0 %v202
    %236 = vmatprep.subr.mxu0 0.0
    %237 = vmatpush1.msra.mxu0 %v201
    %238 = vmatprep.subr.mxu0 0.0
    %239 = vmatpush1.msra.mxu0 %v200
    %240 = vmatprep.subr.mxu0 0.0
    %241 = vmatpush1.msra.mxu0 %v199
    %242 = vmatprep.subr.mxu0 0.0
    %243 = vmatpush1.msra.mxu0 %v198
    %244 = vmatprep.subr.mxu0 0.0
    %245 = vmatpush1.msra.mxu0 %v197
    %246 = vmatprep.subr.mxu0 0.0
    %247 = vmatpush1.msra.mxu0 %v196
    %248 = vmatprep.subr.mxu0 0.0
    %249 = vmatpush1.msra.mxu0 %v195
    %250 = vmatprep.subr.mxu0 0.0
    %251 = vmatpush2.msra.mxu0 0.0
    %252 = vmatprep.subr.mxu0 0.0
    %253 = vmatpush2.msra.mxu0 0.0
    %254 = vmatprep.subr.mxu0 0.0
    %255 = vmatpush2.msra.mxu0 0.0
    %256 = vmatprep.subr.mxu0 0.0
    %257 = vmatpush2.msra.mxu0 0.0
    %258 = vmatprep.subr.mxu0 0.0
    %259 = vmatpush2.msra.mxu0 0.0
    %260 = vmatprep.subr.mxu0 0.0
    %261 = vmatpush2.msra.mxu0 0.0
    %262 = vmatprep.subr.mxu0 0.0
    %263 = vmatpush2.msra.mxu0 0.0
    %264 = vmatprep.subr.mxu0 0.0
    %265 = vmatpush2.msra.mxu0 0.0
    %266 = vmatprep.subr.mxu0 0.0
    %267 = vmatpush2.msra.mxu0 0.0
    %268 = vmatprep.subr.mxu0 0.0
    %269 = vmatpush2.msra.mxu0 0.0
    %270 = vmatprep.subr.mxu0 0.0
    %271 = vmatpush2.msra.mxu0 0.0
    %272 = vmatprep.subr.mxu0 0.0
    %273 = vmatpush2.msra.mxu0 0.0
    %274 = vmatprep.subr.mxu0 0.0
    %275 = vmatpush2.msra.mxu0 0.0
    %276 = vmatprep.subr.mxu0 0.0
    %277 = vmatpush2.msra.mxu0 0.0
    %278 = vmatprep.subr.mxu0 0.0
    %279 = vmatpush2.msra.mxu0 0.0
    %280 = vmatprep.subr.mxu0 0.0
    %281 = vmatpush2.msra.mxu0 0.0
    %282 = vmatprep.mubr.f32.mxu0 0.0
    %283 = vmatmul.mubr.f32.gmra.mxu0 %v194
    %v284 = vpop.f32.mrf.mxu0
    %v285 = vadd.f32 %v216, %v284
    %v286 = vpop.f32.mrf.mxu0
    %287 = vdwg.mxu0
    %v288 = vmul.f32 %v285, 0.2
    %v289 = vmax.f32 %v285, %v288
    %v290 = vld [vmem:[#allocation8] sm:$0xff]
    %v291 = vld [vmem:[#allocation8 + $0x8] sm:$0xff]
    %v292 = vld [vmem:[#allocation8 + $0x10] sm:$0xff]
    %v293 = vld [vmem:[#allocation8 + $0x18] sm:$0xff]
    %v294 = vld [vmem:[#allocation8 + $0x20] sm:$0xff]
    %v295 = vld [vmem:[#allocation8 + $0x28] sm:$0xff]
    %v296 = vld [vmem:[#allocation8 + $0x30] sm:$0xff]
    %v297 = vld [vmem:[#allocation8 + $0x38] sm:$0xff]
    %v298 = vld [vmem:[#allocation8 + $0x40] sm:$0xff]
    %v299 = vld [vmem:[#allocation8 + $0x48] sm:$0xff]
    %v300 = vld [vmem:[#allocation8 + $0x50] sm:$0xff]
    %v301 = vld [vmem:[#allocation8 + $0x58] sm:$0xff]
    %v302 = vld [vmem:[#allocation8 + $0x60] sm:$0xff]
    %v303 = vld [vmem:[#allocation8 + $0x68] sm:$0xff]
    %v304 = vld [vmem:[#allocation8 + $0x70] sm:$0xff]
    %v305 = vld [vmem:[#allocation8 + $0x78] sm:$0xff]
    %v306 = vld [vmem:[%s6] sm:$0x1]
    %v308 = vlaneseq
    %v309 = vshrl.u32 %v308, 7
    %v310 = vsub.s32 0, %v309
    %v311 = vrot.slane %v306, %v310
    %313 = vmatprep.subr.mxu0 0.0
    %314 = vmatpush1.msra.mxu0 %v305
    %315 = vmatprep.subr.mxu0 0.0
    %316 = vmatpush1.msra.mxu0 %v304
    %317 = vmatprep.subr.mxu0 0.0
    %318 = vmatpush1.msra.mxu0 %v303
    %319 = vmatprep.subr.mxu0 0.0
    %320 = vmatpush1.msra.mxu0 %v302
    %321 = vmatprep.subr.mxu0 0.0
    %322 = vmatpush1.msra.mxu0 %v301
    %323 = vmatprep.subr.mxu0 0.0
    %324 = vmatpush1.msra.mxu0 %v300
    %325 = vmatprep.subr.mxu0 0.0
    %326 = vmatpush1.msra.mxu0 %v299
    %327 = vmatprep.subr.mxu0 0.0
    %328 = vmatpush1.msra.mxu0 %v298
    %329 = vmatprep.subr.mxu0 0.0
    %330 = vmatpush1.msra.mxu0 %v297
    %331 = vmatprep.subr.mxu0 0.0
    %332 = vmatpush1.msra.mxu0 %v296
    %333 = vmatprep.subr.mxu0 0.0
    %334 = vmatpush1.msra.mxu0 %v295
    %335 = vmatprep.subr.mxu0 0.0
    %336 = vmatpush1.msra.mxu0 %v294
    %337 = vmatprep.subr.mxu0 0.0
    %338 = vmatpush1.msra.mxu0 %v293
    %339 = vmatprep.subr.mxu0 0.0
    %340 = vmatpush1.msra.mxu0 %v292
    %341 = vmatprep.subr.mxu0 0.0
    %342 = vmatpush1.msra.mxu0 %v291
    %343 = vmatprep.subr.mxu0 0.0
    %344 = vmatpush1.msra.mxu0 %v290
    %345 = vmatprep.subr.mxu0 0.0
    %346 = vmatpush2.msra.mxu0 0.0
    %347 = vmatprep.subr.mxu0 0.0
    %348 = vmatpush2.msra.mxu0 0.0
    %349 = vmatprep.subr.mxu0 0.0
    %350 = vmatpush2.msra.mxu0 0.0
    %351 = vmatprep.subr.mxu0 0.0
    %352 = vmatpush2.msra.mxu0 0.0
    %353 = vmatprep.subr.mxu0 0.0
    %354 = vmatpush2.msra.mxu0 0.0
    %355 = vmatprep.subr.mxu0 0.0
    %356 = vmatpush2.msra.mxu0 0.0
    %357 = vmatprep.subr.mxu0 0.0
    %358 = vmatpush2.msra.mxu0 0.0
    %359 = vmatprep.subr.mxu0 0.0
    %360 = vmatpush2.msra.mxu0 0.0
    %361 = vmatprep.subr.mxu0 0.0
    %362 = vmatpush2.msra.mxu0 0.0
    %363 = vmatprep.subr.mxu0 0.0
    %364 = vmatpush2.msra.mxu0 0.0
    %365 = vmatprep.subr.mxu0 0.0
    %366 = vmatpush2.msra.mxu0 0.0
    %367 = vmatprep.subr.mxu0 0.0
    %368 = vmatpush2.msra.mxu0 0.0
    %369 = vmatprep.subr.mxu0 0.0
    %370 = vmatpush2.msra.mxu0 0.0
    %371 = vmatprep.subr.mxu0 0.0
    %372 = vmatpush2.msra.mxu0 0.0
    %373 = vmatprep.subr.mxu0 0.0
    %374 = vmatpush2.msra.mxu0 0.0
    %375 = vmatprep.subr.mxu0 0.0
    %376 = vmatpush2.msra.mxu0 0.0
    %377 = vmatprep.mubr.f32.mxu0 0.0
    %378 = vmatmul.mubr.f32.gmra.mxu0 %v289
    %v379 = vpop.f32.mrf.mxu0
    %v380 = vadd.f32 %v311, %v379
    %v381 = vpop.f32.mrf.mxu0
    %382 = vdwg.mxu0
    %v383 = vmul.f32 %v380, 0.2
    %v384 = vmax.f32 %v380, %v383
    %v385 = vld [vmem:[#allocation10] sm:$0xff]
    %v386 = vld [vmem:[#allocation10 + $0x8] sm:$0xff]
    %v387 = vld [vmem:[#allocation10 + $0x10] sm:$0xff]
    %v388 = vld [vmem:[#allocation10 + $0x18] sm:$0xff]
    %v389 = vld [vmem:[#allocation10 + $0x20] sm:$0xff]
    %v390 = vld [vmem:[#allocation10 + $0x28] sm:$0xff]
    %v391 = vld [vmem:[#allocation10 + $0x30] sm:$0xff]
    %v392 = vld [vmem:[#allocation10 + $0x38] sm:$0xff]
    %v393 = vld [vmem:[#allocation10 + $0x40] sm:$0xff]
    %v394 = vld [vmem:[#allocation10 + $0x48] sm:$0xff]
    %v395 = vld [vmem:[#allocation10 + $0x50] sm:$0xff]
    %v396 = vld [vmem:[#allocation10 + $0x58] sm:$0xff]
    %v397 = vld [vmem:[#allocation10 + $0x60] sm:$0xff]
    %v398 = vld [vmem:[#allocation10 + $0x68] sm:$0xff]
    %v399 = vld [vmem:[#allocation10 + $0x70] sm:$0xff]
    %v400 = vld [vmem:[#allocation10 + $0x78] sm:$0xff]
    %v401 = vld [vmem:[%s8] sm:$0x1]
    %v403 = vlaneseq
    %v404 = vshrl.u32 %v403, 7
    %v405 = vsub.s32 0, %v404
    %v406 = vrot.slane %v401, %v405
    %408 = vmatprep.subr.mxu0 0.0
    %409 = vmatpush1.msra.mxu0 %v400
    %410 = vmatprep.subr.mxu0 0.0
    %411 = vmatpush1.msra.mxu0 %v399
    %412 = vmatprep.subr.mxu0 0.0
    %413 = vmatpush1.msra.mxu0 %v398
    %414 = vmatprep.subr.mxu0 0.0
    %415 = vmatpush1.msra.mxu0 %v397
    %416 = vmatprep.subr.mxu0 0.0
    %417 = vmatpush1.msra.mxu0 %v396
    %418 = vmatprep.subr.mxu0 0.0
    %419 = vmatpush1.msra.mxu0 %v395
    %420 = vmatprep.subr.mxu0 0.0
    %421 = vmatpush1.msra.mxu0 %v394
    %422 = vmatprep.subr.mxu0 0.0
    %423 = vmatpush1.msra.mxu0 %v393
    %424 = vmatprep.subr.mxu0 0.0
    %425 = vmatpush1.msra.mxu0 %v392
    %426 = vmatprep.subr.mxu0 0.0
    %427 = vmatpush1.msra.mxu0 %v391
    %428 = vmatprep.subr.mxu0 0.0
    %429 = vmatpush1.msra.mxu0 %v390
    %430 = vmatprep.subr.mxu0 0.0
    %431 = vmatpush1.msra.mxu0 %v389
    %432 = vmatprep.subr.mxu0 0.0
    %433 = vmatpush1.msra.mxu0 %v388
    %434 = vmatprep.subr.mxu0 0.0
    %435 = vmatpush1.msra.mxu0 %v387
    %436 = vmatprep.subr.mxu0 0.0
    %437 = vmatpush1.msra.mxu0 %v386
    %438 = vmatprep.subr.mxu0 0.0
    %439 = vmatpush1.msra.mxu0 %v385
    %440 = vmatprep.subr.mxu0 0.0
    %441 = vmatpush2.msra.mxu0 0.0
    %442 = vmatprep.subr.mxu0 0.0
    %443 = vmatpush2.msra.mxu0 0.0
    %444 = vmatprep.subr.mxu0 0.0
    %445 = vmatpush2.msra.mxu0 0.0
    %446 = vmatprep.subr.mxu0 0.0
    %447 = vmatpush2.msra.mxu0 0.0
    %448 = vmatprep.subr.mxu0 0.0
    %449 = vmatpush2.msra.mxu0 0.0
    %450 = vmatprep.subr.mxu0 0.0
    %451 = vmatpush2.msra.mxu0 0.0
    %452 = vmatprep.subr.mxu0 0.0
    %453 = vmatpush2.msra.mxu0 0.0
    %454 = vmatprep.subr.mxu0 0.0
    %455 = vmatpush2.msra.mxu0 0.0
    %456 = vmatprep.subr.mxu0 0.0
    %457 = vmatpush2.msra.mxu0 0.0
    %458 = vmatprep.subr.mxu0 0.0
    %459 = vmatpush2.msra.mxu0 0.0
    %460 = vmatprep.subr.mxu0 0.0
    %461 = vmatpush2.msra.mxu0 0.0
    %462 = vmatprep.subr.mxu0 0.0
    %463 = vmatpush2.msra.mxu0 0.0
    %464 = vmatprep.subr.mxu0 0.0
    %465 = vmatpush2.msra.mxu0 0.0
    %466 = vmatprep.subr.mxu0 0.0
    %467 = vmatpush2.msra.mxu0 0.0
    %468 = vmatprep.subr.mxu0 0.0
    %469 = vmatpush2.msra.mxu0 0.0
    %470 = vmatprep.subr.mxu0 0.0
    %471 = vmatpush2.msra.mxu0 0.0
    %472 = vmatprep.mubr.f32.mxu0 0.0
    %473 = vmatmul.mubr.f32.gmra.mxu0 %v384
    %v474 = vpop.f32.mrf.mxu0
    %v475 = vadd.f32 %v406, %v474
    %v476 = vpop.f32.mrf.mxu0
    %477 = vdwg.mxu0
    %478 = vst [vmem:[#allocation11] sm:$0xff] %v475
    // Predicated region
    $region58: #{tpu_custom_call.1} parent=1 // pred_check
      _
    $region59: #{tpu_custom_call.1} parent=1 // pred_check_branch
      %480 = sbr.rel (0) target = $region61
    $region60: #{tpu_custom_call.1} parent=1 // pred_region
      %s482 = ssub.s32 128, 128
      %483 = vsyncadd [#allocation4], %s482
      %s485 = sshll.u32 [#allocation11], 4
      %s486 = int_to_ptr.vmem [resolvable:$true] %s485
      %488 = dma.vmem_to_hbm [thread:$0]  %s486, 128, %s9, [#allocation4]
    $region61: #{tpu_custom_call.1} parent=1 // pred_fallthru
      _
    // Predicated region
    $region62: #{tpu_custom_call.1} parent=1 // pred_check
      _
    $region63: #{tpu_custom_call.1} parent=1 // pred_check_branch
      %490 = sbr.rel (0) target = $region65
    $region64: #{tpu_custom_call.1} parent=1 // pred_region
      %491 = dma.done [#allocation4], 128
    $region65: #{tpu_custom_call.1} parent=1 // pred_fallthru
      _
    %492 = vsyncpa [#allocation3], 1
    %493 = vsyncpa [#allocation6], 1
    %494 = vsyncpa [#allocation9], 1
    %495 = vsyncpa [#allocation4], 1

// kernel: tpu_custom_call.1
$region0: #{tpu_custom_call.1}
  #allocation0 [shape = 'u32[]', space=smem, size = 0x4, offset = 0x4, fixed_abs, tag = 'smem constant byte address 0x4 - core index']
  #allocation1 [shape = 'u32[144,128]{1,0:T(1,128)}', space=vmem, size = 0x12000, scoped, tag = 'internal scratch']
  %s0 = inlined_call_operand.hbm [shape: f32[8,128], index: 0, kind: input, shape index: {}]
  %s1 = inlined_call_operand.hbm [shape: f32[128,128], index: 1, kind: input, shape index: {}]
  %s2 = inlined_call_operand.vmem [shape: f32[1,128], index: 2, kind: input, shape index: {}]
  %s3 = inlined_call_operand.hbm [shape: f32[128,128], index: 3, kind: input, shape index: {}]
  %s4 = inlined_call_operand.vmem [shape: f32[1,128], index: 4, kind: input, shape index: {}]
  %s5 = inlined_call_operand.hbm [shape: f32[128,128], index: 5, kind: input, shape index: {}]
  %s6 = inlined_call_operand.vmem [shape: f32[1,128], index: 6, kind: input, shape index: {}]
  %s7 = inlined_call_operand.hbm [shape: f32[128,128], index: 7, kind: input, shape index: {}]
  %s8 = inlined_call_operand.vmem [shape: f32[1,128], index: 8, kind: input, shape index: {}]
  %s9 = inlined_call_operand.hbm [shape: f32[8,128], index: 9, kind: output, shape index: {}]
  %s10 = sld [smem:[#allocation0]]
  $region66: #{tpu_custom_call.1} parent=0
    _
  %s12 = ssub.s32 1, %s10
  %s13 = scalar_select 0, %s12, %s10
  $region1: #{tpu_custom_call.1} parent=0
    #allocation2 [shape = 'u8[4096]{0}', space=vmem, size = 0x1000, scoped, tag = 'input window, operand 0, single buffered']
    #allocation3 [shape = 's32[1]{0}', space=sflag, size = 0x4, scoped, tag = 'scoped memory for tpu_custom_call.1']
    #allocation4 [shape = 's32[1]{0}', space=sflag, size = 0x4, scoped, tag = 'scoped memory for tpu_custom_call.1']
    #allocation5 [shape = 'u8[65536]{0}', space=vmem, size = 0x10000, scoped, tag = 'input window, operand 1, single buffered']
    #allocation6 [shape = 's32[1]{0}', space=sflag, size = 0x4, scoped, tag = 'scoped memory for tpu_custom_call.1']
    #allocation7 [shape = 'u8[65536]{0}', space=vmem, size = 0x10000, scoped, tag = 'input window, operand 3, single buffered']
    #allocation8 [shape = 'u8[65536]{0}', space=vmem, size = 0x10000, scoped, tag = 'input window, operand 5, single buffered']
    #allocation9 [shape = 's32[1]{0}', space=sflag, size = 0x4, scoped, tag = 'scoped memory for tpu_custom_call.1']
    #allocation10 [shape = 'u8[65536]{0}', space=vmem, size = 0x10000, scoped, tag = 'input window, operand 7, single buffered']
    #allocation11 [shape = 'u8[4096]{0}', space=vmem, size = 0x1000, scoped, tag = 'output window, operand 0, single buffered']
    %14 = vsyncpa [#allocation3], 0
    %15 = vsyncpa [#allocation6], 0
    %16 = vsyncpa [#allocation9], 0
    %17 = vsyncpa [#allocation4], 0
    // Predicated region
    $region2: #{tpu_custom_call.1} parent=1 // pred_check
      _
    $region3: #{tpu_custom_call.1} parent=1 // pred_check_branch
      %19 = sbr.rel (0) target = $region5
    $region4: #{tpu_custom_call.1} parent=1 // pred_region
      %s21 = ssub.s32 128, 128
      %22 = vsyncadd [#allocation3], %s21
      %s24 = sshll.u32 [#allocation2], 4
      %s25 = int_to_ptr.vmem [resolvable:$true] %s24
      %27 = dma.hbm_to_vmem [thread:$0]  %s0, 128, %s25, [#allocation3]
    $region5: #{tpu_custom_call.1} parent=1 // pred_fallthru
      _
    // Predicated region
    $region6: #{tpu_custom_call.1} parent=1 // pred_check
      _
    $region7: #{tpu_custom_call.1} parent=1 // pred_check_branch
      %29 = sbr.rel (0) target = $region9
    $region8: #{tpu_custom_call.1} parent=1 // pred_region
      %s31 = ssub.s32 2048, 2048
      %32 = vsyncadd [#allocation6], %s31
      %s33 = sshll.u32 [#allocation5], 4
      %s34 = int_to_ptr.vmem [resolvable:$true] %s33
      %39 = dma.hbm_to_vmem [thread:$0]  %s1, 2048, %s34, [#allocation6], 128, 128, 8
    $region9: #{tpu_custom_call.1} parent=1 // pred_fallthru
      _
    // Predicated region
    $region10: #{tpu_custom_call.1} parent=1 // pred_check
      _
    $region11: #{tpu_custom_call.1} parent=1 // pred_check_branch
      %41 = sbr.rel (0) target = $region13
    $region12: #{tpu_custom_call.1} parent=1 // pred_region
      _
    $region13: #{tpu_custom_call.1} parent=1 // pred_fallthru
      _
    // Predicated region
    $region14: #{tpu_custom_call.1} parent=1 // pred_check
      _
    $region15: #{tpu_custom_call.1} parent=1 // pred_check_branch
      %43 = sbr.rel (0) target = $region17
    $region16: #{tpu_custom_call.1} parent=1 // pred_region
      %s45 = ssub.s32 2048, 2048
      %46 = vsyncadd [#allocation6], %s45
      %s47 = sshll.u32 [#allocation7], 4
      %s48 = int_to_ptr.vmem [resolvable:$true] %s47
      %53 = dma.hbm_to_vmem [thread:$0]  %s3, 2048, %s48, [#allocation6], 128, 128, 8
    $region17: #{tpu_custom_call.1} parent=1 // pred_fallthru
      _
    // Predicated region
    $region18: #{tpu_custom_call.1} parent=1 // pred_check
      _
    $region19: #{tpu_custom_call.1} parent=1 // pred_check_branch
      %55 = sbr.rel (0) target = $region21
    $region20: #{tpu_custom_call.1} parent=1 // pred_region
      _
    $region21: #{tpu_custom_call.1} parent=1 // pred_fallthru
      _
    // Predicated region
    $region22: #{tpu_custom_call.1} parent=1 // pred_check
      _
    $region23: #{tpu_custom_call.1} parent=1 // pred_check_branch
      %57 = sbr.rel (0) target = $region25
    $region24: #{tpu_custom_call.1} parent=1 // pred_region
      %s59 = ssub.s32 2048, 2048
      %60 = vsyncadd [#allocation9], %s59
      %s61 = sshll.u32 [#allocation8], 4
      %s62 = int_to_ptr.vmem [resolvable:$true] %s61
      %67 = dma.hbm_to_vmem [thread:$0]  %s5, 2048, %s62, [#allocation9], 128, 128, 8
    $region25: #{tpu_custom_call.1} parent=1 // pred_fallthru
      _
    // Predicated region
    $region26: #{tpu_custom_call.1} parent=1 // pred_check
      _
    $region27: #{tpu_custom_call.1} parent=1 // pred_check_branch
      %69 = sbr.rel (0) target = $region29
    $region28: #{tpu_custom_call.1} parent=1 // pred_region
      _
    $region29: #{tpu_custom_call.1} parent=1 // pred_fallthru
      _
    // Predicated region
    $region30: #{tpu_custom_call.1} parent=1 // pred_check
      _
    $region31: #{tpu_custom_call.1} parent=1 // pred_check_branch
      %71 = sbr.rel (0) target = $region33
    $region32: #{tpu_custom_call.1} parent=1 // pred_region
      %s73 = ssub.s32 2048, 2048
      %74 = vsyncadd [#allocation9], %s73
      %s75 = sshll.u32 [#allocation10], 4
      %s76 = int_to_ptr.vmem [resolvable:$true] %s75
      %81 = dma.hbm_to_vmem [thread:$0]  %s7, 2048, %s76, [#allocation9], 128, 128, 8
    $region33: #{tpu_custom_call.1} parent=1 // pred_fallthru
      _
    // Predicated region
    $region34: #{tpu_custom_call.1} parent=1 // pred_check
      _
    $region35: #{tpu_custom_call.1} parent=1 // pred_check_branch
      %83 = sbr.rel (0) target = $region37
    $region36: #{tpu_custom_call.1} parent=1 // pred_region
      _
    $region37: #{tpu_custom_call.1} parent=1 // pred_fallthru
      _
    // Predicated region
    $region38: #{tpu_custom_call.1} parent=1 // pred_check
      _
    $region39: #{tpu_custom_call.1} parent=1 // pred_check_branch
      %85 = sbr.rel (0) target = $region41
    $region40: #{tpu_custom_call.1} parent=1 // pred_region
      %86 = dma.done [#allocation3], 128
    $region41: #{tpu_custom_call.1} parent=1 // pred_fallthru
      _
    // Predicated region
    $region42: #{tpu_custom_call.1} parent=1 // pred_check
      _
    $region43: #{tpu_custom_call.1} parent=1 // pred_check_branch
      %88 = sbr.rel (0) target = $region45
    $region44: #{tpu_custom_call.1} parent=1 // pred_region
      %89 = dma.done [#allocation6], 2048
    $region45: #{tpu_custom_call.1} parent=1 // pred_fallthru
      _
    // Predicated region
    $region46: #{tpu_custom_call.1} parent=1 // pred_check
      _
    $region47: #{tpu_custom_call.1} parent=1 // pred_check_branch
      %91 = sbr.rel (0) target = $region49
    $region48: #{tpu_custom_call.1} parent=1 // pred_region
      %92 = dma.done [#allocation6], 2048
    $region49: #{tpu_custom_call.1} parent=1 // pred_fallthru
      _
    // Predicated region
    $region50: #{tpu_custom_call.1} parent=1 // pred_check
      _
    $region51: #{tpu_custom_call.1} parent=1 // pred_check_branch
      %94 = sbr.rel (0) target = $region53
    $region52: #{tpu_custom_call.1} parent=1 // pred_region
      %95 = dma.done [#allocation9], 2048
    $region53: #{tpu_custom_call.1} parent=1 // pred_fallthru
      _
    // Predicated region
    $region54: #{tpu_custom_call.1} parent=1 // pred_check
      _
    $region55: #{tpu_custom_call.1} parent=1 // pred_check_branch
      %97 = sbr.rel (0) target = $region57
    $region56: #{tpu_custom_call.1} parent=1 // pred_region
      %98 = dma.done [#allocation9], 2048
    $region57: #{tpu_custom_call.1} parent=1 // pred_fallthru
      _
    %v99 = vld [vmem:[#allocation2] sm:$0xff]
    %v100 = vld [vmem:[#allocation5] sm:$0xff]
    %v101 = vld [vmem:[#allocation5 + $0x8] sm:$0xff]
    %v102 = vld [vmem:[#allocation5 + $0x10] sm:$0xff]
    %v103 = vld [vmem:[#allocation5 + $0x18] sm:$0xff]
    %v104 = vld [vmem:[#allocation5 + $0x20] sm:$0xff]
    %v105 = vld [vmem:[#allocation5 + $0x28] sm:$0xff]
    %v106 = vld [vmem:[#allocation5 + $0x30] sm:$0xff]
    %v107 = vld [vmem:[#allocation5 + $0x38] sm:$0xff]
    %v108 = vld [vmem:[#allocation5 + $0x40] sm:$0xff]
    %v109 = vld [vmem:[#allocation5 + $0x48] sm:$0xff]
    %v110 = vld [vmem:[#allocation5 + $0x50] sm:$0xff]
    %v111 = vld [vmem:[#allocation5 + $0x58] sm:$0xff]
    %v112 = vld [vmem:[#allocation5 + $0x60] sm:$0xff]
    %v113 = vld [vmem:[#allocation5 + $0x68] sm:$0xff]
    %v114 = vld [vmem:[#allocation5 + $0x70] sm:$0xff]
    %v115 = vld [vmem:[#allocation5 + $0x78] sm:$0xff]
    %v116 = vld [vmem:[%s2] sm:$0x1]
    %v118 = vlaneseq
    %v119 = vshrl.u32 %v118, 7
    %v120 = vsub.s32 0, %v119
    %v121 = vrot.slane %v116, %v120
    %123 = vmatprep.subr.mxu0 0.0
    %124 = vmatpush1.msra.mxu0 %v115
    %125 = vmatprep.subr.mxu0 0.0
    %126 = vmatpush1.msra.mxu0 %v114
    %127 = vmatprep.subr.mxu0 0.0
    %128 = vmatpush1.msra.mxu0 %v113
    %129 = vmatprep.subr.mxu0 0.0
    %130 = vmatpush1.msra.mxu0 %v112
    %131 = vmatprep.subr.mxu0 0.0
    %132 = vmatpush1.msra.mxu0 %v111
    %133 = vmatprep.subr.mxu0 0.0
    %134 = vmatpush1.msra.mxu0 %v110
    %135 = vmatprep.subr.mxu0 0.0
    %136 = vmatpush1.msra.mxu0 %v109
    %137 = vmatprep.subr.mxu0 0.0
    %138 = vmatpush1.msra.mxu0 %v108
    %139 = vmatprep.subr.mxu0 0.0
    %140 = vmatpush1.msra.mxu0 %v107
    %141 = vmatprep.subr.mxu0 0.0
    %142 = vmatpush1.msra.mxu0 %v106
    %143 = vmatprep.subr.mxu0 0.0
    %144 = vmatpush1.msra.mxu0 %v105
    %145 = vmatprep.subr.mxu0 0.0
    %146 = vmatpush1.msra.mxu0 %v104
    %147 = vmatprep.subr.mxu0 0.0
    %148 = vmatpush1.msra.mxu0 %v103
    %149 = vmatprep.subr.mxu0 0.0
    %150 = vmatpush1.msra.mxu0 %v102
    %151 = vmatprep.subr.mxu0 0.0
    %152 = vmatpush1.msra.mxu0 %v101
    %153 = vmatprep.subr.mxu0 0.0
    %154 = vmatpush1.msra.mxu0 %v100
    %155 = vmatprep.subr.mxu0 0.0
    %156 = vmatpush2.msra.mxu0 0.0
    %157 = vmatprep.subr.mxu0 0.0
    %158 = vmatpush2.msra.mxu0 0.0
    %159 = vmatprep.subr.mxu0 0.0
    %160 = vmatpush2.msra.mxu0 0.0
    %161 = vmatprep.subr.mxu0 0.0
    %162 = vmatpush2.msra.mxu0 0.0
    %163 = vmatprep.subr.mxu0 0.0
    %164 = vmatpush2.msra.mxu0 0.0
    %165 = vmatprep.subr.mxu0 0.0
    %166 = vmatpush2.msra.mxu0 0.0
    %167 = vmatprep.subr.mxu0 0.0
    %168 = vmatpush2.msra.mxu0 0.0
    %169 = vmatprep.subr.mxu0 0.0
    %170 = vmatpush2.msra.mxu0 0.0
    %171 = vmatprep.subr.mxu0 0.0
    %172 = vmatpush2.msra.mxu0 0.0
    %173 = vmatprep.subr.mxu0 0.0
    %174 = vmatpush2.msra.mxu0 0.0
    %175 = vmatprep.subr.mxu0 0.0
    %176 = vmatpush2.msra.mxu0 0.0
    %177 = vmatprep.subr.mxu0 0.0
    %178 = vmatpush2.msra.mxu0 0.0
    %179 = vmatprep.subr.mxu0 0.0
    %180 = vmatpush2.msra.mxu0 0.0
    %181 = vmatprep.subr.mxu0 0.0
    %182 = vmatpush2.msra.mxu0 0.0
    %183 = vmatprep.subr.mxu0 0.0
    %184 = vmatpush2.msra.mxu0 0.0
    %185 = vmatprep.subr.mxu0 0.0
    %186 = vmatpush2.msra.mxu0 0.0
    %187 = vmatprep.mubr.f32.mxu0 0.0
    %188 = vmatmul.mubr.f32.gmra.mxu0 %v99
    %v189 = vpop.f32.mrf.mxu0
    %v190 = vadd.f32 %v121, %v189
    %v191 = vpop.f32.mrf.mxu0
    %192 = vdwg.mxu0
    %v193 = vmul.f32 %v190, 0.2
    %v194 = vmax.f32 %v190, %v193
    %v195 = vld [vmem:[#allocation7] sm:$0xff]
    %v196 = vld [vmem:[#allocation7 + $0x8] sm:$0xff]
    %v197 = vld [vmem:[#allocation7 + $0x10] sm:$0xff]
    %v198 = vld [vmem:[#allocation7 + $0x18] sm:$0xff]
    %v199 = vld [vmem:[#allocation7 + $0x20] sm:$0xff]
    %v200 = vld [vmem:[#allocation7 + $0x28] sm:$0xff]
    %v201 = vld [vmem:[#allocation7 + $0x30] sm:$0xff]
    %v202 = vld [vmem:[#allocation7 + $0x38] sm:$0xff]
    %v203 = vld [vmem:[#allocation7 + $0x40] sm:$0xff]
    %v204 = vld [vmem:[#allocation7 + $0x48] sm:$0xff]
    %v205 = vld [vmem:[#allocation7 + $0x50] sm:$0xff]
    %v206 = vld [vmem:[#allocation7 + $0x58] sm:$0xff]
    %v207 = vld [vmem:[#allocation7 + $0x60] sm:$0xff]
    %v208 = vld [vmem:[#allocation7 + $0x68] sm:$0xff]
    %v209 = vld [vmem:[#allocation7 + $0x70] sm:$0xff]
    %v210 = vld [vmem:[#allocation7 + $0x78] sm:$0xff]
    %v211 = vld [vmem:[%s4] sm:$0x1]
    %v213 = vlaneseq
    %v214 = vshrl.u32 %v213, 7
    %v215 = vsub.s32 0, %v214
    %v216 = vrot.slane %v211, %v215
    %218 = vmatprep.subr.mxu0 0.0
    %219 = vmatpush1.msra.mxu0 %v210
    %220 = vmatprep.subr.mxu0 0.0
    %221 = vmatpush1.msra.mxu0 %v209
    %222 = vmatprep.subr.mxu0 0.0
    %223 = vmatpush1.msra.mxu0 %v208
    %224 = vmatprep.subr.mxu0 0.0
    %225 = vmatpush1.msra.mxu0 %v207
    %226 = vmatprep.subr.mxu0 0.0
    %227 = vmatpush1.msra.mxu0 %v206
    %228 = vmatprep.subr.mxu0 0.0
    %229 = vmatpush1.msra.mxu0 %v205
    %230 = vmatprep.subr.mxu0 0.0
    %231 = vmatpush1.msra.mxu0 %v204
    %232 = vmatprep.subr.mxu0 0.0
    %233 = vmatpush1.msra.mxu0 %v203
    %234 = vmatprep.subr.mxu0 0.0
    %235 = vmatpush1.msra.mxu0 %v202
    %236 = vmatprep.subr.mxu0 0.0
    %237 = vmatpush1.msra.mxu0 %v201
    %238 = vmatprep.subr.mxu0 0.0
    %239 = vmatpush1.msra.mxu0 %v200
    %240 = vmatprep.subr.mxu0 0.0
    %241 = vmatpush1.msra.mxu0 %v199
    %242 = vmatprep.subr.mxu0 0.0
    %243 = vmatpush1.msra.mxu0 %v198
    %244 = vmatprep.subr.mxu0 0.0
    %245 = vmatpush1.msra.mxu0 %v197
    %246 = vmatprep.subr.mxu0 0.0
    %247 = vmatpush1.msra.mxu0 %v196
    %248 = vmatprep.subr.mxu0 0.0
    %249 = vmatpush1.msra.mxu0 %v195
    %250 = vmatprep.subr.mxu0 0.0
    %251 = vmatpush2.msra.mxu0 0.0
    %252 = vmatprep.subr.mxu0 0.0
    %253 = vmatpush2.msra.mxu0 0.0
    %254 = vmatprep.subr.mxu0 0.0
    %255 = vmatpush2.msra.mxu0 0.0
    %256 = vmatprep.subr.mxu0 0.0
    %257 = vmatpush2.msra.mxu0 0.0
    %258 = vmatprep.subr.mxu0 0.0
    %259 = vmatpush2.msra.mxu0 0.0
    %260 = vmatprep.subr.mxu0 0.0
    %261 = vmatpush2.msra.mxu0 0.0
    %262 = vmatprep.subr.mxu0 0.0
    %263 = vmatpush2.msra.mxu0 0.0
    %264 = vmatprep.subr.mxu0 0.0
    %265 = vmatpush2.msra.mxu0 0.0
    %266 = vmatprep.subr.mxu0 0.0
    %267 = vmatpush2.msra.mxu0 0.0
    %268 = vmatprep.subr.mxu0 0.0
    %269 = vmatpush2.msra.mxu0 0.0
    %270 = vmatprep.subr.mxu0 0.0
    %271 = vmatpush2.msra.mxu0 0.0
    %272 = vmatprep.subr.mxu0 0.0
    %273 = vmatpush2.msra.mxu0 0.0
    %274 = vmatprep.subr.mxu0 0.0
    %275 = vmatpush2.msra.mxu0 0.0
    %276 = vmatprep.subr.mxu0 0.0
    %277 = vmatpush2.msra.mxu0 0.0
    %278 = vmatprep.subr.mxu0 0.0
    %279 = vmatpush2.msra.mxu0 0.0
    %280 = vmatprep.subr.mxu0 0.0
    %281 = vmatpush2.msra.mxu0 0.0
    %282 = vmatprep.mubr.f32.mxu0 0.0
    %283 = vmatmul.mubr.f32.gmra.mxu0 %v194
    %v284 = vpop.f32.mrf.mxu0
    %v285 = vadd.f32 %v216, %v284
    %v286 = vpop.f32.mrf.mxu0
    %287 = vdwg.mxu0
    %v288 = vmul.f32 %v285, 0.2
    %v289 = vmax.f32 %v285, %v288
    %v290 = vld [vmem:[#allocation8] sm:$0xff]
    %v291 = vld [vmem:[#allocation8 + $0x8] sm:$0xff]
    %v292 = vld [vmem:[#allocation8 + $0x10] sm:$0xff]
    %v293 = vld [vmem:[#allocation8 + $0x18] sm:$0xff]
    %v294 = vld [vmem:[#allocation8 + $0x20] sm:$0xff]
    %v295 = vld [vmem:[#allocation8 + $0x28] sm:$0xff]
    %v296 = vld [vmem:[#allocation8 + $0x30] sm:$0xff]
    %v297 = vld [vmem:[#allocation8 + $0x38] sm:$0xff]
    %v298 = vld [vmem:[#allocation8 + $0x40] sm:$0xff]
    %v299 = vld [vmem:[#allocation8 + $0x48] sm:$0xff]
    %v300 = vld [vmem:[#allocation8 + $0x50] sm:$0xff]
    %v301 = vld [vmem:[#allocation8 + $0x58] sm:$0xff]
    %v302 = vld [vmem:[#allocation8 + $0x60] sm:$0xff]
    %v303 = vld [vmem:[#allocation8 + $0x68] sm:$0xff]
    %v304 = vld [vmem:[#allocation8 + $0x70] sm:$0xff]
    %v305 = vld [vmem:[#allocation8 + $0x78] sm:$0xff]
    %v306 = vld [vmem:[%s6] sm:$0x1]
    %v308 = vlaneseq
    %v309 = vshrl.u32 %v308, 7
    %v310 = vsub.s32 0, %v309
    %v311 = vrot.slane %v306, %v310
    %313 = vmatprep.subr.mxu0 0.0
    %314 = vmatpush1.msra.mxu0 %v305
    %315 = vmatprep.subr.mxu0 0.0
    %316 = vmatpush1.msra.mxu0 %v304
    %317 = vmatprep.subr.mxu0 0.0
    %318 = vmatpush1.msra.mxu0 %v303
    %319 = vmatprep.subr.mxu0 0.0
    %320 = vmatpush1.msra.mxu0 %v302
    %321 = vmatprep.subr.mxu0 0.0
    %322 = vmatpush1.msra.mxu0 %v301
    %323 = vmatprep.subr.mxu0 0.0
    %324 = vmatpush1.msra.mxu0 %v300
    %325 = vmatprep.subr.mxu0 0.0
    %326 = vmatpush1.msra.mxu0 %v299
    %327 = vmatprep.subr.mxu0 0.0
    %328 = vmatpush1.msra.mxu0 %v298
    %329 = vmatprep.subr.mxu0 0.0
    %330 = vmatpush1.msra.mxu0 %v297
    %331 = vmatprep.subr.mxu0 0.0
    %332 = vmatpush1.msra.mxu0 %v296
    %333 = vmatprep.subr.mxu0 0.0
    %334 = vmatpush1.msra.mxu0 %v295
    %335 = vmatprep.subr.mxu0 0.0
    %336 = vmatpush1.msra.mxu0 %v294
    %337 = vmatprep.subr.mxu0 0.0
    %338 = vmatpush1.msra.mxu0 %v293
    %339 = vmatprep.subr.mxu0 0.0
    %340 = vmatpush1.msra.mxu0 %v292
    %341 = vmatprep.subr.mxu0 0.0
    %342 = vmatpush1.msra.mxu0 %v291
    %343 = vmatprep.subr.mxu0 0.0
    %344 = vmatpush1.msra.mxu0 %v290
    %345 = vmatprep.subr.mxu0 0.0
    %346 = vmatpush2.msra.mxu0 0.0
    %347 = vmatprep.subr.mxu0 0.0
    %348 = vmatpush2.msra.mxu0 0.0
    %349 = vmatprep.subr.mxu0 0.0
    %350 = vmatpush2.msra.mxu0 0.0
    %351 = vmatprep.subr.mxu0 0.0
    %352 = vmatpush2.msra.mxu0 0.0
    %353 = vmatprep.subr.mxu0 0.0
    %354 = vmatpush2.msra.mxu0 0.0
    %355 = vmatprep.subr.mxu0 0.0
    %356 = vmatpush2.msra.mxu0 0.0
    %357 = vmatprep.subr.mxu0 0.0
    %358 = vmatpush2.msra.mxu0 0.0
    %359 = vmatprep.subr.mxu0 0.0
    %360 = vmatpush2.msra.mxu0 0.0
    %361 = vmatprep.subr.mxu0 0.0
    %362 = vmatpush2.msra.mxu0 0.0
    %363 = vmatprep.subr.mxu0 0.0
    %364 = vmatpush2.msra.mxu0 0.0
    %365 = vmatprep.subr.mxu0 0.0
    %366 = vmatpush2.msra.mxu0 0.0
    %367 = vmatprep.subr.mxu0 0.0
    %368 = vmatpush2.msra.mxu0 0.0
    %369 = vmatprep.subr.mxu0 0.0
    %370 = vmatpush2.msra.mxu0 0.0
    %371 = vmatprep.subr.mxu0 0.0
    %372 = vmatpush2.msra.mxu0 0.0
    %373 = vmatprep.subr.mxu0 0.0
    %374 = vmatpush2.msra.mxu0 0.0
    %375 = vmatprep.subr.mxu0 0.0
    %376 = vmatpush2.msra.mxu0 0.0
    %377 = vmatprep.mubr.f32.mxu0 0.0
    %378 = vmatmul.mubr.f32.gmra.mxu0 %v289
    %v379 = vpop.f32.mrf.mxu0
    %v380 = vadd.f32 %v311, %v379
    %v381 = vpop.f32.mrf.mxu0
    %382 = vdwg.mxu0
    %v383 = vmul.f32 %v380, 0.2
    %v384 = vmax.f32 %v380, %v383
    %v385 = vld [vmem:[#allocation10] sm:$0xff]
    %v386 = vld [vmem:[#allocation10 + $0x8] sm:$0xff]
    %v387 = vld [vmem:[#allocation10 + $0x10] sm:$0xff]
    %v388 = vld [vmem:[#allocation10 + $0x18] sm:$0xff]
    %v389 = vld [vmem:[#allocation10 + $0x20] sm:$0xff]
    %v390 = vld [vmem:[#allocation10 + $0x28] sm:$0xff]
    %v391 = vld [vmem:[#allocation10 + $0x30] sm:$0xff]
    %v392 = vld [vmem:[#allocation10 + $0x38] sm:$0xff]
    %v393 = vld [vmem:[#allocation10 + $0x40] sm:$0xff]
    %v394 = vld [vmem:[#allocation10 + $0x48] sm:$0xff]
    %v395 = vld [vmem:[#allocation10 + $0x50] sm:$0xff]
    %v396 = vld [vmem:[#allocation10 + $0x58] sm:$0xff]
    %v397 = vld [vmem:[#allocation10 + $0x60] sm:$0xff]
    %v398 = vld [vmem:[#allocation10 + $0x68] sm:$0xff]
    %v399 = vld [vmem:[#allocation10 + $0x70] sm:$0xff]
    %v400 = vld [vmem:[#allocation10 + $0x78] sm:$0xff]
    %v401 = vld [vmem:[%s8] sm:$0x1]
    %v403 = vlaneseq
    %v404 = vshrl.u32 %v403, 7
    %v405 = vsub.s32 0, %v404
    %v406 = vrot.slane %v401, %v405
    %408 = vmatprep.subr.mxu0 0.0
    %409 = vmatpush1.msra.mxu0 %v400
    %410 = vmatprep.subr.mxu0 0.0
    %411 = vmatpush1.msra.mxu0 %v399
    %412 = vmatprep.subr.mxu0 0.0
    %413 = vmatpush1.msra.mxu0 %v398
    %414 = vmatprep.subr.mxu0 0.0
    %415 = vmatpush1.msra.mxu0 %v397
    %416 = vmatprep.subr.mxu0 0.0
    %417 = vmatpush1.msra.mxu0 %v396
    %418 = vmatprep.subr.mxu0 0.0
    %419 = vmatpush1.msra.mxu0 %v395
    %420 = vmatprep.subr.mxu0 0.0
    %421 = vmatpush1.msra.mxu0 %v394
    %422 = vmatprep.subr.mxu0 0.0
    %423 = vmatpush1.msra.mxu0 %v393
    %424 = vmatprep.subr.mxu0 0.0
    %425 = vmatpush1.msra.mxu0 %v392
    %426 = vmatprep.subr.mxu0 0.0
    %427 = vmatpush1.msra.mxu0 %v391
    %428 = vmatprep.subr.mxu0 0.0
    %429 = vmatpush1.msra.mxu0 %v390
    %430 = vmatprep.subr.mxu0 0.0
    %431 = vmatpush1.msra.mxu0 %v389
    %432 = vmatprep.subr.mxu0 0.0
    %433 = vmatpush1.msra.mxu0 %v388
    %434 = vmatprep.subr.mxu0 0.0
    %435 = vmatpush1.msra.mxu0 %v387
    %436 = vmatprep.subr.mxu0 0.0
    %437 = vmatpush1.msra.mxu0 %v386
    %438 = vmatprep.subr.mxu0 0.0
    %439 = vmatpush1.msra.mxu0 %v385
    %440 = vmatprep.subr.mxu0 0.0
    %441 = vmatpush2.msra.mxu0 0.0
    %442 = vmatprep.subr.mxu0 0.0
    %443 = vmatpush2.msra.mxu0 0.0
    %444 = vmatprep.subr.mxu0 0.0
    %445 = vmatpush2.msra.mxu0 0.0
    %446 = vmatprep.subr.mxu0 0.0
    %447 = vmatpush2.msra.mxu0 0.0
    %448 = vmatprep.subr.mxu0 0.0
    %449 = vmatpush2.msra.mxu0 0.0
    %450 = vmatprep.subr.mxu0 0.0
    %451 = vmatpush2.msra.mxu0 0.0
    %452 = vmatprep.subr.mxu0 0.0
    %453 = vmatpush2.msra.mxu0 0.0
    %454 = vmatprep.subr.mxu0 0.0
    %455 = vmatpush2.msra.mxu0 0.0
    %456 = vmatprep.subr.mxu0 0.0
    %457 = vmatpush2.msra.mxu0 0.0
    %458 = vmatprep.subr.mxu0 0.0
    %459 = vmatpush2.msra.mxu0 0.0
    %460 = vmatprep.subr.mxu0 0.0
    %461 = vmatpush2.msra.mxu0 0.0
    %462 = vmatprep.subr.mxu0 0.0
    %463 = vmatpush2.msra.mxu0 0.0
    %464 = vmatprep.subr.mxu0 0.0
    %465 = vmatpush2.msra.mxu0 0.0
    %466 = vmatprep.subr.mxu0 0.0
    %467 = vmatpush2.msra.mxu0 0.0
    %468 = vmatprep.subr.mxu0 0.0
    %469 = vmatpush2.msra.mxu0 0.0
    %470 = vmatprep.subr.mxu0 0.0
    %471 = vmatpush2.msra.mxu0 0.0
    %472 = vmatprep.mubr.f32.mxu0 0.0
    %473 = vmatmul.mubr.f32.gmra.mxu0 %v384
    %v474 = vpop.f32.mrf.mxu0
    %v475 = vadd.f32 %v406, %v474
    %v476 = vpop.f32.mrf.mxu0
    %477 = vdwg.mxu0
    %478 = vst [vmem:[#allocation11] sm:$0xff] %v475
    // Predicated region
    $region58: #{tpu_custom_call.1} parent=1 // pred_check
      _
    $region59: #{tpu_custom_call.1} parent=1 // pred_check_branch
      %480 = sbr.rel (0) target = $region61
    $region60: #{tpu_custom_call.1} parent=1 // pred_region
      %s482 = ssub.s32 128, 128
      %483 = vsyncadd [#allocation4], %s482
      %s485 = sshll.u32 [#allocation11], 4
      %s486 = int_to_ptr.vmem [resolvable:$true] %s485
      %488 = dma.vmem_to_hbm [thread:$0]  %s486, 128, %s9, [#allocation4]
    $region61: #{tpu_custom_call.1} parent=1 // pred_fallthru
      _
    // Predicated region
    $region62: #{tpu_custom_call.1} parent=1 // pred_check
      _
    $region63: #{tpu_custom_call.1} parent=1 // pred_check_branch
      %490 = sbr.rel (0) target = $region65
    $region64: #{tpu_custom_call.1} parent=1 // pred_region
      %491 = dma.done [#allocation4], 128
    $region65: #{tpu_custom_call.1} parent=1 // pred_fallthru
      _
    %492 = vsyncpa [#allocation3], 1
    %493 = vsyncpa [#allocation6], 1
    %494 = vsyncpa [#allocation9], 1
    %495 = vsyncpa [#allocation4], 1

</llo_original>
